<compile_context>
chip_gen: v5e
topology: v5e:2x2
jax: 0.10.0
libtpu: 0.0.40
codegen_flags: <defaults>
</compile_context>

<pallas_src>
import functools
import math

import jax
import jax.numpy as jnp
from jax.experimental import pallas as pl
from jax.experimental.pallas import tpu as pltpu

# bf16 on the MXU (f32 accumulation) is the native fast path on v5e/v6e/v7x.
MATMUL_DTYPE = jnp.bfloat16
LN_EPS = 1e-5


# --------------------------------------------------------------------------
# Shared math helpers (used both inside the kernel and in the jnp reference)
# --------------------------------------------------------------------------

def _gelu_tanh(y):
    # TODO(synk): PyTorch nn.GELU defaults to the exact erf form; tanh approximation is
    # used for a guaranteed Mosaic lowering (~1e-3 deviation).
    c = math.sqrt(2.0 / math.pi)
    return 0.5 * y * (1.0 + jnp.tanh(c * (y + 0.044715 * y * y * y)))


def _layernorm(y, gamma, beta, eps=LN_EPS):
    mu = jnp.mean(y, axis=-1, keepdims=True)
    d = y - mu
    var = jnp.mean(d * d, axis=-1, keepdims=True)
    return d * jax.lax.rsqrt(var + eps) * gamma + beta


def get_positional_embed(seq_len, feature_size):
    # TODO(synk): the original get_positional_embed (Enformer basis features) is not in
    # the provided source; deterministic exponential-decay features with the same
    # (2*seq_len-1, feature_size) shape and signed-copy structure are used instead.
    distances = jnp.arange(-(seq_len - 1), seq_len, dtype=jnp.float32)
    half = feature_size // 2
    rates = jnp.linspace(1.0, float(seq_len), half)
    feats = jnp.exp(-jnp.abs(distances)[:, None] / rates[None, :])
    return jnp.concatenate([feats, jnp.sign(distances)[:, None] * feats], axis=-1)


# --------------------------------------------------------------------------
# Fused BasicLayer kernel.  grid = (batch, depth); one SwinTransformerBlock per
# depth step, token block resident in VMEM scratch across blocks.
# --------------------------------------------------------------------------

def _basic_layer_kernel(x_ref, wqkv_ref, wout_ref, bout_ref, g1_ref, be1_ref,
                        w1_ref, b1_ref, w2_ref, b2_ref, g2_ref, be2_ref,
                        cb_ref, pb_ref, relk_ref, o_ref, y_vmem, *,
                        num_heads, dim_key, window, eps):
    H, D, w = num_heads, dim_key, window
    d_blk = pl.program_id(1)                       # depth index (innermost grid axis)

    # First block of each batch element: pull the token block into the VMEM carry.
    @pl.when(d_blk == 0)
    def _():
        y_vmem[...] = x_ref[...]

    x = y_vmem[...]                                # (N, C) f32, resident across depth
    N, C = x.shape
    W = N // w
    scale = D ** -0.5

    # ---- qkv projection, head-batched so heads live on a leading batch dim -------
    # Same total MXU flops as one (N,C)@(C,3HD) matmul; avoids any lane->sublane
    # relayout of the head dimension.
    xb = jnp.broadcast_to(x.astype(MATMUL_DTYPE)[None], (H, N, C))
    qkv = jnp.einsum("hnc,hcf->hnf", xb, wqkv_ref[...],
                     preferred_element_type=jnp.float32)          # (H, N, 3D)
    q = qkv[:, :, 0 * D:1 * D]                                    # (H, N, D)
    k = qkv[:, :, 1 * D:2 * D]
    v = qkv[:, :, 2 * D:3 * D]

    # Fold the content / position biases into the queries so both logit terms are
    # pure MXU matmuls (no separate cross-lane reductions).
    qc = (q + cb_ref[...]).astype(MATMUL_DTYPE)                   # cb: (H, 1, D)
    qp = (q + pb_ref[...]).astype(MATMUL_DTYPE)                   # pb: (H, 1, D)
    kb = k.astype(MATMUL_DTYPE)
    vb = v.astype(MATMUL_DTYPE)

    # ---- content logits: (q + content_bias) @ k^T per window, batched over (H*W) --
    qc_g = qc.reshape(H * W, w, D)
    k_g = kb.reshape(H * W, w, D)
    v_g = vb.reshape(H * W, w, D)
    content = jnp.einsum("gid,gjd->gij", qc_g, k_g,
                         preferred_element_type=jnp.float32)      # (H*W, w, w)

    # ---- position logits on the MXU: (q + pos_bias) @ rel_k^T, then relative shift -
    rel_logits = jnp.einsum("hnd,hrd->hnr", qp, relk_ref[...],
                            preferred_element_type=jnp.float32)   # (H, N, 2w-1)
    # relative_shift_swin: pos[h, a*w+i, j] = rel_logits[h, a*w+i, j - i + (w-1)],
    # realized with w static lane slices selected by the intra-window row position
    # (no gathers, no lane<->sublane reshapes).
    row = jax.lax.broadcasted_iota(jnp.int32, (N, 1), 0) % w      # (N, 1)
    pos = jnp.zeros((H, N, w), jnp.float32)
    for i in range(w):
        shifted = rel_logits[:, :, w - 1 - i:2 * w - 1 - i]       # (H, N, w)
        pos = jnp.where((row == i)[None], shifted, pos)
    pos_g = pos.reshape(H * W, w, w)

    # ---- softmax (exact) + attention-weighted values ------------------------------
    attn = content * scale + pos_g
    attn = attn - jnp.max(attn, axis=-1, keepdims=True)
    e = jnp.exp(attn)
    p = e / jnp.sum(e, axis=-1, keepdims=True)
    out = jnp.einsum("gij,gjd->gid", p.astype(MATMUL_DTYPE), v_g,
                     preferred_element_type=jnp.float32)          # (H*W, w, D)

    # ---- output projection: per-head matmul summed over heads == concat @ w_out ---
    out_h = out.reshape(H, N, D).astype(MATMUL_DTYPE)
    proj = jnp.einsum("hnd,hdc->hnc", out_h, wout_ref[...],
                      preferred_element_type=jnp.float32)
    proj = jnp.sum(proj, axis=0) + bout_ref[...]                  # (N, C)

    # Residual(Sequential(attn, Dropout, LayerNorm)); dropout = identity (eval).
    att = _layernorm(proj, g1_ref[...], be1_ref[...], eps) + x

    # Mlp + Residual(Sequential(Mlp, Dropout, LayerNorm)).
    h1 = jnp.dot(att.astype(MATMUL_DTYPE), w1_ref[...],
                 preferred_element_type=jnp.float32) + b1_ref[...]
    h1 = _gelu_tanh(h1)
    mlp = jnp.dot(h1.astype(MATMUL_DTYPE), w2_ref[...],
                  preferred_element_type=jnp.float32) + b2_ref[...]
    y = _layernorm(mlp, g2_ref[...], be2_ref[...], eps) + att

    # torch.roll(x, shift_size, dims=1): -w/2 for even blocks, +w/2 for odd blocks.
    half = w // 2
    y = jnp.where((d_blk % 2) == 0,
                  jnp.roll(y, -half, axis=0),
                  jnp.roll(y, half, axis=0))

    y_vmem[...] = y      # carry to the next block (same batch element)
    o_ref[...] = y       # output block index constant over depth; last write lands


# --------------------------------------------------------------------------
# Hoisted, input-independent preprocessing (runs once per parameter set,
# OUTSIDE the jitted forward).
# --------------------------------------------------------------------------

def _prep_block(p, *, num_heads, dim_key, window_size):
    H, D, w = num_heads, dim_key, window_size
    a = p["attn"]
    C = a["w_qkv"].shape[0]
    hidden = p["mlp"]["w1"].shape[1]

    # torch '(h d k)' qkv columns -> per-head (H, C, 3*D) with [q | k | v] blocks.
    w_qkv_h = (a["w_qkv"].reshape(C, H, D, 3).transpose(1, 0, 3, 2)
               .reshape(H, C, 3 * D)).astype(MATMUL_DTYPE)
    w_out_h = a["w_out"].reshape(H, D, C).astype(MATMUL_DTYPE)

    positions = get_positional_embed(w, a["w_rel"].shape[0])
    rel_k = jnp.matmul(positions, a["w_rel"],
                       precision=jax.lax.Precision.HIGHEST)
    rel_k = rel_k.reshape(2 * w - 1, H, D).transpose(1, 0, 2)     # (H, 2w-1, D)

    return dict(
        w_qkv=w_qkv_h,
        w_out=w_out_h,
        b_out=a["b_out"].reshape(1, C),
        ln1_g=p["ln1_g"].reshape(1, C), ln1_b=p["ln1_b"].reshape(1, C),
        w1=p["mlp"]["w1"].astype(MATMUL_DTYPE), b1=p["mlp"]["b1"].reshape(1, hidden),
        w2=p["mlp"]["w2"].astype(MATMUL_DTYPE), b2=p["mlp"]["b2"].reshape(1, C),
        ln2_g=p["ln2_g"].reshape(1, C), ln2_b=p["ln2_b"].reshape(1, C),
        cb=a["rel_content_bias"].reshape(H, 1, D),
        pb=a["rel_pos_bias"].reshape(H, 1, D),
        rel_k=rel_k.astype(MATMUL_DTYPE),
    )


def prepare_basic_layer(blocks_params, *, num_heads, dim_key, window_size):
    per = [_prep_block(p, num_heads=num_heads, dim_key=dim_key,
                       window_size=window_size) for p in blocks_params]
    # stack every prepped field along a leading depth axis for index_map selection
    return jax.tree_util.tree_map(lambda *xs: jnp.stack(xs, axis=0), *per)


# --------------------------------------------------------------------------
# Forward wrapper: one pallas_call for the whole BasicLayer.
# --------------------------------------------------------------------------

def basic_layer_forward(x, prepped, *, num_heads, dim_key, window_size):
    B, N, C = x.shape
    HD = num_heads * dim_key
    depth = int(prepped["w_qkv"].shape[0])
    hidden = int(prepped["w1"].shape[-1])
    w = window_size
    assert N >= w, "sequence too short for the window"
    # TODO(synk): padding + attention-mask path for N % window_size != 0 not implemented.
    assert N % w == 0

    weight_keys = ("w_qkv", "w_out", "b_out", "ln1_g", "ln1_b", "w1", "b1",
                   "w2", "b2", "ln2_g", "ln2_b", "cb", "pb", "rel_k")
    weight_ops = [prepped[kk] for kk in weight_keys]

    def depth_spec(arr):
        tail = tuple(int(s) for s in arr.shape[1:])
        zeros = (0,) * len(tail)
        return pl.BlockSpec((pl.Squeezed(),) + tail,
                            lambda b, d, _z=zeros: (d,) + _z)

    x_spec = pl.BlockSpec((pl.Squeezed(), N, C), lambda b, d: (b, 0, 0))
    out_spec = pl.BlockSpec((pl.Squeezed(), N, C), lambda b, d: (b, 0, 0))
    in_specs = [x_spec] + [depth_spec(a) for a in weight_ops]

    flops_block = (2 * N * C * 3 * HD            # qkv projection
                   + 2 * N * w * HD              # content logits
                   + 2 * N * (2 * w - 1) * HD    # position logits
                   + 2 * N * w * HD              # attn @ v
                   + 2 * N * HD * C              # out projection
                   + 4 * N * C * hidden)         # MLP
    cost = pl.CostEstimate(
        flops=B * depth * flops_block,
        transcendentals=B * depth * (num_heads * N * w + N * hidden + 2 * N),
        bytes_accessed=2 * x.size * x.dtype.itemsize
        + sum(int(a.size) * a.dtype.itemsize for a in weight_ops))

    y = pl.pallas_call(
        functools.partial(_basic_layer_kernel, num_heads=num_heads, dim_key=dim_key,
                          window=w, eps=LN_EPS),
        out_shape=jax.ShapeDtypeStruct((B, N, C), jnp.float32),
        grid=(B, depth),
        in_specs=in_specs,
        out_specs=out_spec,
        scratch_shapes=[pltpu.VMEM((N, C), jnp.float32)],   # token block carried across depth
        compiler_params=pltpu.CompilerParams(
            dimension_semantics=("parallel", "arbitrary")),
        cost_estimate=cost,
    )(x, *weight_ops)
    return y, y   # downsample=None -> (x, down=x)


# --------------------------------------------------------------------------
# Pure-jnp reference mirroring the PyTorch module (same bf16-operand /
# f32-accumulate matmul policy) -- correctness gate.
# --------------------------------------------------------------------------

def ref_window_attention(x, p, *, num_heads, dim_key, window_size):
    B, N, C = x.shape
    H, D, w = num_heads, dim_key, window_size
    W = N // w
    qkv = jnp.einsum("bnc,cf->bnf", x.astype(MATMUL_DTYPE),
                     p["w_qkv"].astype(MATMUL_DTYPE),
                     preferred_element_type=jnp.float32)
    qkv = qkv.reshape(B, N, H, D, 3)
    qkv = jnp.transpose(qkv, (4, 0, 2, 1, 3))            # 'b n (h d k) -> k b h n d'
    q, k, v = qkv[0], qkv[1], qkv[2]
    qw = q.reshape(B, H, W, w, D)
    kw = k.reshape(B, H, W, w, D)
    vw = v.reshape(B, H, W, w, D)

    positions = get_positional_embed(w, p["w_rel"].shape[0])
    rel_k = jnp.matmul(positions, p["w_rel"], precision=jax.lax.Precision.HIGHEST)
    rel_k = rel_k.reshape(2 * w - 1, H, D).transpose(1, 0, 2)

    cb = p["rel_content_bias"][None, :, None, None, :]
    pb = p["rel_pos_bias"][None, :, None, None, :]
    content = jnp.einsum("bhaid,bhajd->bhaij", (qw + cb).astype(MATMUL_DTYPE),
                         kw.astype(MATMUL_DTYPE),
                         preferred_element_type=jnp.float32) * (D ** -0.5)
    rel_logits = jnp.einsum("bhaid,hrd->bhair", (qw + pb).astype(MATMUL_DTYPE),
                            rel_k.astype(MATMUL_DTYPE),
                            preferred_element_type=jnp.float32)
    idx = jnp.arange(w)[None, :] - jnp.arange(w)[:, None] + (w - 1)
    pos = jnp.take_along_axis(
        rel_logits, jnp.broadcast_to(idx, rel_logits.shape[:-1] + (w,)), axis=-1)
    attn = jax.nn.softmax(content + pos, axis=-1)
    out = jnp.einsum("bhaij,bhajd->bhaid", attn.astype(MATMUL_DTYPE),
                     vw.astype(MATMUL_DTYPE), preferred_element_type=jnp.float32)
    out = jnp.transpose(out, (0, 2, 3, 1, 4)).reshape(B, N, H * D)
    return jnp.einsum("bnf,fc->bnc", out.astype(MATMUL_DTYPE),
                      p["w_out"].astype(MATMUL_DTYPE),
                      preferred_element_type=jnp.float32) + p["b_out"]


def ref_block_forward(x, p, *, num_heads, dim_key, window_size, shift_size):
    a = ref_window_attention(x, p["attn"], num_heads=num_heads, dim_key=dim_key,
                             window_size=window_size)
    x = _layernorm(a, p["ln1_g"], p["ln1_b"]) + x
    h = jnp.einsum("bnc,ch->bnh", x.astype(MATMUL_DTYPE),
                   p["mlp"]["w1"].astype(MATMUL_DTYPE),
                   preferred_element_type=jnp.float32) + p["mlp"]["b1"]
    h = _gelu_tanh(h)
    m = jnp.einsum("bnh,hc->bnc", h.astype(MATMUL_DTYPE),
                   p["mlp"]["w2"].astype(MATMUL_DTYPE),
                   preferred_element_type=jnp.float32) + p["mlp"]["b2"]
    x = _layernorm(m, p["ln2_g"], p["ln2_b"]) + x
    return jnp.roll(x, shift_size, axis=1)


def ref_basic_layer(x, blocks_params, *, num_heads, dim_key, window_size):
    half = window_size // 2
    for i, p in enumerate(blocks_params):
        x = ref_block_forward(x, p, num_heads=num_heads, dim_key=dim_key,
                              window_size=window_size,
                              shift_size=-half if i % 2 == 0 else half)
    return x, x


# --------------------------------------------------------------------------
# Deterministic parameter init (synthetic; dropout treated as identity)
# --------------------------------------------------------------------------

def trunc_normal(key, shape, std=0.02):
    return std * jax.random.truncated_normal(key, -2.0, 2.0, shape, jnp.float32)


def init_block_params(key, *, dim, dim_key, num_heads, mlp_ratio):
    hd = dim_key * num_heads                   # = num_rel_pos_features (default)
    hidden = int(dim * mlp_ratio)
    ks = jax.random.split(key, 8)
    return {
        "attn": {
            "w_qkv": trunc_normal(ks[0], (dim, hd * 3)),
            "w_rel": trunc_normal(ks[1], (hd, hd)),
            "rel_content_bias": jax.random.normal(ks[2], (num_heads, dim_key), jnp.float32),
            "rel_pos_bias": jax.random.normal(ks[3], (num_heads, dim_key), jnp.float32),
            "w_out": trunc_normal(ks[4], (hd, dim)),
            "b_out": jnp.zeros((dim,), jnp.float32),
        },
        "ln1_g": jnp.ones((dim,), jnp.float32),
        "ln1_b": jnp.zeros((dim,), jnp.float32),
        "mlp": {
            "w1": trunc_normal(ks[5], (dim, hidden)),
            "b1": jnp.zeros((hidden,), jnp.float32),
            "w2": trunc_normal(ks[6], (hidden, dim)),
            "b2": jnp.zeros((dim,), jnp.float32),
        },
        "ln2_g": jnp.ones((dim,), jnp.float32),
        "ln2_b": jnp.zeros((dim,), jnp.float32),
    }


if __name__ == "__main__":
    B, N, C = 2, 16, 32                 # batch, sequence (input_resolution), dim
    num_heads, dim_key, window_size = 4, 8, 8
    depth, mlp_ratio = 2, 4.0

    root = jax.random.PRNGKey(0)
    kx, kp = jax.random.split(root)
    x = jax.random.normal(kx, (B, N, C), jnp.float32)
    blocks_params = [
        init_block_params(k, dim=C, dim_key=dim_key, num_heads=num_heads,
                          mlp_ratio=mlp_ratio)
        for k in jax.random.split(kp, depth)
    ]

    # Hoisted, input-independent prep (runs once per parameter set, outside the
    # jitted forward).
    prepped = prepare_basic_layer(blocks_params, num_heads=num_heads,
                                  dim_key=dim_key, window_size=window_size)
    prepped = jax.block_until_ready(prepped)

    fwd = jax.jit(functools.partial(basic_layer_forward, num_heads=num_heads,
                                    dim_key=dim_key, window_size=window_size))
    out, down = fwd(x, prepped)
    jax.block_until_ready((out, down))
    assert out.shape == (B, N, C) and down.shape == (B, N, C)

    # correctness gate: fused Pallas path vs pure-jnp reference of the same math
    ref_out, _ = jax.jit(functools.partial(ref_basic_layer, num_heads=num_heads,
                                           dim_key=dim_key,
                                           window_size=window_size))(x, blocks_params)
    err = float(jnp.max(jnp.abs(out - ref_out)))
    assert jnp.allclose(out, ref_out, atol=2e-2, rtol=2e-2), \
        f"kernel/reference mismatch: {err}"
    print("KERNEL_OK")
</pallas_src>

<mosaic_0001>
module attributes {stable_mosaic.version = 11 : i64} {
  func.func @_basic_layer_kernel(%arg0: i32, %arg1: i32, %arg2: memref<1x16x32xf32, #tpu.memory_space<vmem>>, %arg3: memref<1x4x32x24xbf16, #tpu.memory_space<vmem>>, %arg4: memref<1x4x8x32xbf16, #tpu.memory_space<vmem>>, %arg5: memref<1x1x32xf32, #tpu.memory_space<vmem>>, %arg6: memref<1x1x32xf32, #tpu.memory_space<vmem>>, %arg7: memref<1x1x32xf32, #tpu.memory_space<vmem>>, %arg8: memref<1x32x128xbf16, #tpu.memory_space<vmem>>, %arg9: memref<1x1x128xf32, #tpu.memory_space<vmem>>, %arg10: memref<1x128x32xbf16, #tpu.memory_space<vmem>>, %arg11: memref<1x1x32xf32, #tpu.memory_space<vmem>>, %arg12: memref<1x1x32xf32, #tpu.memory_space<vmem>>, %arg13: memref<1x1x32xf32, #tpu.memory_space<vmem>>, %arg14: memref<1x4x1x8xf32, #tpu.memory_space<vmem>>, %arg15: memref<1x4x1x8xf32, #tpu.memory_space<vmem>>, %arg16: memref<1x4x15x8xbf16, #tpu.memory_space<vmem>>, %arg17: memref<1x16x32xf32, #tpu.memory_space<vmem>>, %arg18: memref<16x32xf32, #tpu.memory_space<vmem>>) attributes {dimension_semantics = [#tpu.dimension_semantics<parallel>, #tpu.dimension_semantics<arbitrary>], iteration_bounds = array<i64: 2, 2>, scalar_prefetch = 0 : i64, scratch_operands = 1 : i64, tpu.core_type = #tpu.core_type<tc>, window_params = [{transform_indices = @transform_0, window_bounds = array<i64: 1, 16, 32>}, {transform_indices = @transform_1, window_bounds = array<i64: 1, 4, 32, 24>}, {transform_indices = @transform_2, window_bounds = array<i64: 1, 4, 8, 32>}, {transform_indices = @transform_3, window_bounds = array<i64: 1, 1, 32>}, {transform_indices = @transform_4, window_bounds = array<i64: 1, 1, 32>}, {transform_indices = @transform_5, window_bounds = array<i64: 1, 1, 32>}, {transform_indices = @transform_6, window_bounds = array<i64: 1, 32, 128>}, {transform_indices = @transform_7, window_bounds = array<i64: 1, 1, 128>}, {transform_indices = @transform_8, window_bounds = array<i64: 1, 128, 32>}, {transform_indices = @transform_9, window_bounds = array<i64: 1, 1, 32>}, {transform_indices = @transform_10, window_bounds = array<i64: 1, 1, 32>}, {transform_indices = @transform_11, window_bounds = array<i64: 1, 1, 32>}, {transform_indices = @transform_12, window_bounds = array<i64: 1, 4, 1, 8>}, {transform_indices = @transform_13, window_bounds = array<i64: 1, 4, 1, 8>}, {transform_indices = @transform_14, window_bounds = array<i64: 1, 4, 15, 8>}, {transform_indices = @transform_15, window_bounds = array<i64: 1, 16, 32>}]} {
    %c0_i32 = arith.constant 0 : i32
    %0 = arith.cmpi eq, %arg1, %c0_i32 : i32
    %1 = arith.extui %0 : i1 to i32
    %c0_i32_0 = arith.constant 0 : i32
    %2 = arith.cmpi ne, %1, %c0_i32_0 : i32
    scf.if %2 {
      %c0_92 = arith.constant 0 : index
      %c0_93 = arith.constant 0 : index
      %c0_94 = arith.constant 0 : index
      %233 = vector.load %arg2[%c0_92, %c0_93, %c0_94] : memref<1x16x32xf32, #tpu.memory_space<vmem>>, vector<1x16x32xf32>
      %234 = vector.shape_cast %233 : vector<1x16x32xf32> to vector<16x32xf32>
      %c0_95 = arith.constant 0 : index
      %c0_96 = arith.constant 0 : index
      %235 = vector.load %arg18[%c0_95, %c0_96] : memref<16x32xf32, #tpu.memory_space<vmem>>, vector<16x32xf32>
      tpu.vector_store %arg18[%c0_95, %c0_96], %234 {strides = array<i32>} : memref<16x32xf32, #tpu.memory_space<vmem>>, vector<16x32xf32>,
    } else {
    }
    %c0 = arith.constant 0 : index
    %c0_1 = arith.constant 0 : index
    %3 = vector.load %arg18[%c0, %c0_1] : memref<16x32xf32, #tpu.memory_space<vmem>>, vector<16x32xf32>
    %4 = arith.truncf %3 : vector<16x32xf32> to vector<16x32xbf16>
    %5 = vector.shape_cast %4 : vector<16x32xbf16> to vector<1x16x32xbf16>
    %6 = vector.shape_cast %5 : vector<1x16x32xbf16> to vector<1x16x32xbf16>
    %7 = vector.broadcast %6 : vector<1x16x32xbf16> to vector<4x16x32xbf16>
    %c0_2 = arith.constant 0 : index
    %c0_3 = arith.constant 0 : index
    %c0_4 = arith.constant 0 : index
    %c0_5 = arith.constant 0 : index
    %8 = vector.load %arg3[%c0_2, %c0_3, %c0_4, %c0_5] : memref<1x4x32x24xbf16, #tpu.memory_space<vmem>>, vector<1x4x32x24xbf16>
    %9 = vector.shape_cast %8 : vector<1x4x32x24xbf16> to vector<4x32x24xbf16>
    "tpu.trace_start"() <{level = 10 : i32, message = "hnc,hcf->hnf"}> : () -> ()
    %cst = arith.constant dense<0.000000e+00> : vector<4x16x24xf32>
    %10 = tpu.matmul %7, %9, %cst {dimension_numbers = #tpu.dot_dimension_numbers<[2], [1], [1], [2], [0, 0, 0, 1, 1, 2], [0], [0]>} : vector<4x16x32xbf16>, vector<4x32x24xbf16>, vector<4x16x24xf32> -> vector<4x16x24xf32>
    "tpu.trace_stop"() : () -> ()
    %11 = vector.extract_strided_slice %10 {offsets = [0, 0, 0], sizes = [4, 16, 8], strides = [1, 1, 1]} : vector<4x16x24xf32> to vector<4x16x8xf32>
    %12 = vector.extract_strided_slice %10 {offsets = [0, 0, 8], sizes = [4, 16, 8], strides = [1, 1, 1]} : vector<4x16x24xf32> to vector<4x16x8xf32>
    %13 = vector.extract_strided_slice %10 {offsets = [0, 0, 16], sizes = [4, 16, 8], strides = [1, 1, 1]} : vector<4x16x24xf32> to vector<4x16x8xf32>
    %c0_6 = arith.constant 0 : index
    %c0_7 = arith.constant 0 : index
    %c0_8 = arith.constant 0 : index
    %c0_9 = arith.constant 0 : index
    %14 = vector.load %arg14[%c0_6, %c0_7, %c0_8, %c0_9] : memref<1x4x1x8xf32, #tpu.memory_space<vmem>>, vector<1x4x1x8xf32>
    %15 = vector.shape_cast %14 : vector<1x4x1x8xf32> to vector<4x1x8xf32>
    %16 = vector.broadcast %15 : vector<4x1x8xf32> to vector<4x16x8xf32>
    %17 = arith.addf %11, %16 : vector<4x16x8xf32>
    %18 = arith.truncf %17 : vector<4x16x8xf32> to vector<4x16x8xbf16>
    %c0_10 = arith.constant 0 : index
    %c0_11 = arith.constant 0 : index
    %c0_12 = arith.constant 0 : index
    %c0_13 = arith.constant 0 : index
    %19 = vector.load %arg15[%c0_10, %c0_11, %c0_12, %c0_13] : memref<1x4x1x8xf32, #tpu.memory_space<vmem>>, vector<1x4x1x8xf32>
    %20 = vector.shape_cast %19 : vector<1x4x1x8xf32> to vector<4x1x8xf32>
    %21 = vector.broadcast %20 : vector<4x1x8xf32> to vector<4x16x8xf32>
    %22 = arith.addf %11, %21 : vector<4x16x8xf32>
    %23 = arith.truncf %22 : vector<4x16x8xf32> to vector<4x16x8xbf16>
    %24 = arith.truncf %12 : vector<4x16x8xf32> to vector<4x16x8xbf16>
    %25 = arith.truncf %13 : vector<4x16x8xf32> to vector<4x16x8xbf16>
    %26 = vector.shape_cast %18 : vector<4x16x8xbf16> to vector<8x8x8xbf16>
    %27 = vector.shape_cast %24 : vector<4x16x8xbf16> to vector<8x8x8xbf16>
    %28 = vector.shape_cast %25 : vector<4x16x8xbf16> to vector<8x8x8xbf16>
    "tpu.trace_start"() <{level = 10 : i32, message = "gid,gjd->gij"}> : () -> ()
    %cst_14 = arith.constant dense<0.000000e+00> : vector<8x8x8xf32>
    %29 = tpu.matmul %26, %27, %cst_14 {dimension_numbers = #tpu.dot_dimension_numbers<[2], [2], [1], [1], [0, 0, 0, 1, 1, 1], [0], [0]>} : vector<8x8x8xbf16>, vector<8x8x8xbf16>, vector<8x8x8xf32> -> vector<8x8x8xf32>
    "tpu.trace_stop"() : () -> ()
    %c0_15 = arith.constant 0 : index
    %c0_16 = arith.constant 0 : index
    %c0_17 = arith.constant 0 : index
    %c0_18 = arith.constant 0 : index
    %30 = vector.load %arg16[%c0_15, %c0_16, %c0_17, %c0_18] : memref<1x4x15x8xbf16, #tpu.memory_space<vmem>>, vector<1x4x15x8xbf16>
    %31 = vector.shape_cast %30 : vector<1x4x15x8xbf16> to vector<4x15x8xbf16>
    "tpu.trace_start"() <{level = 10 : i32, message = "hnd,hrd->hnr"}> : () -> ()
    %cst_19 = arith.constant dense<0.000000e+00> : vector<4x16x15xf32>
    %32 = tpu.matmul %23, %31, %cst_19 {dimension_numbers = #tpu.dot_dimension_numbers<[2], [2], [1], [1], [0, 0, 0, 1, 1, 1], [0], [0]>} : vector<4x16x8xbf16>, vector<4x15x8xbf16>, vector<4x16x15xf32> -> vector<4x16x15xf32>
    "tpu.trace_stop"() : () -> ()
    %33 = tpu.iota {dimensions = array<i32: 0>} : vector<16x1xi32>
    %c8_i32 = arith.constant 8 : i32
    %c0_i32_20 = arith.constant 0 : i32
    %34 = arith.cmpi eq, %c8_i32, %c0_i32_20 : i32
    %c1_i32 = arith.constant 1 : i32
    %35 = arith.select %34, %c1_i32, %c8_i32 : i32
    %36 = vector.broadcast %35 : i32 to vector<16x1xi32>
    %37 = arith.remsi %33, %36 : vector<16x1xi32>
    %c0_i32_21 = arith.constant 0 : i32
    %38 = vector.broadcast %c0_i32_21 : i32 to vector<16x1xi32>
    %39 = arith.cmpi ne, %37, %38 : vector<16x1xi32>
    %c0_i32_22 = arith.constant 0 : i32
    %40 = vector.broadcast %c0_i32_22 : i32 to vector<16x1xi32>
    %41 = arith.cmpi slt, %37, %40 : vector<16x1xi32>
    %c0_i32_23 = arith.constant 0 : i32
    %42 = arith.cmpi slt, %35, %c0_i32_23 : i32
    %43 = vector.broadcast %42 : i1 to vector<16x1xi1>
    %44 = vector.broadcast %43 : vector<16x1xi1> to vector<16x1xi1>
    %45 = arith.xori %41, %44 : vector<16x1xi1>
    %46 = arith.andi %45, %39 : vector<16x1xi1>
    %47 = vector.broadcast %35 : i32 to vector<16x1xi32>
    %48 = arith.addi %37, %47 : vector<16x1xi32>
    %49 = arith.select %46, %48, %37 : vector<16x1xi1>, vector<16x1xi32>
    %cst_24 = arith.constant 0.000000e+00 : f32
    %50 = vector.broadcast %cst_24 : f32 to vector<4x16x8xf32>
    %51 = vector.extract_strided_slice %32 {offsets = [0, 0, 7], sizes = [4, 16, 8], strides = [1, 1, 1]} : vector<4x16x15xf32> to vector<4x16x8xf32>
    %c0_i32_25 = arith.constant 0 : i32
    %52 = vector.broadcast %c0_i32_25 : i32 to vector<16x1xi32>
    %53 = arith.cmpi eq, %49, %52 : vector<16x1xi32>
    %54 = vector.shape_cast %53 : vector<16x1xi1> to vector<1x16x1xi1>
    %55 = vector.shape_cast %54 : vector<1x16x1xi1> to vector<1x16x1xi1>
    %56 = vector.broadcast %55 : vector<1x16x1xi1> to vector<4x16x8xi1>
    %57 = arith.select %56, %51, %50 : vector<4x16x8xi1>, vector<4x16x8xf32>
    %58 = vector.extract_strided_slice %32 {offsets = [0, 0, 6], sizes = [4, 16, 8], strides = [1, 1, 1]} : vector<4x16x15xf32> to vector<4x16x8xf32>
    %c1_i32_26 = arith.constant 1 : i32
    %59 = vector.broadcast %c1_i32_26 : i32 to vector<16x1xi32>
    %60 = arith.cmpi eq, %49, %59 : vector<16x1xi32>
    %61 = vector.shape_cast %60 : vector<16x1xi1> to vector<1x16x1xi1>
    %62 = vector.shape_cast %61 : vector<1x16x1xi1> to vector<1x16x1xi1>
    %63 = vector.broadcast %62 : vector<1x16x1xi1> to vector<4x16x8xi1>
    %64 = arith.select %63, %58, %57 : vector<4x16x8xi1>, vector<4x16x8xf32>
    %65 = vector.extract_strided_slice %32 {offsets = [0, 0, 5], sizes = [4, 16, 8], strides = [1, 1, 1]} : vector<4x16x15xf32> to vector<4x16x8xf32>
    %c2_i32 = arith.constant 2 : i32
    %66 = vector.broadcast %c2_i32 : i32 to vector<16x1xi32>
    %67 = arith.cmpi eq, %49, %66 : vector<16x1xi32>
    %68 = vector.shape_cast %67 : vector<16x1xi1> to vector<1x16x1xi1>
    %69 = vector.shape_cast %68 : vector<1x16x1xi1> to vector<1x16x1xi1>
    %70 = vector.broadcast %69 : vector<1x16x1xi1> to vector<4x16x8xi1>
    %71 = arith.select %70, %65, %64 : vector<4x16x8xi1>, vector<4x16x8xf32>
    %72 = vector.extract_strided_slice %32 {offsets = [0, 0, 4], sizes = [4, 16, 8], strides = [1, 1, 1]} : vector<4x16x15xf32> to vector<4x16x8xf32>
    %c3_i32 = arith.constant 3 : i32
    %73 = vector.broadcast %c3_i32 : i32 to vector<16x1xi32>
    %74 = arith.cmpi eq, %49, %73 : vector<16x1xi32>
    %75 = vector.shape_cast %74 : vector<16x1xi1> to vector<1x16x1xi1>
    %76 = vector.shape_cast %75 : vector<1x16x1xi1> to vector<1x16x1xi1>
    %77 = vector.broadcast %76 : vector<1x16x1xi1> to vector<4x16x8xi1>
    %78 = arith.select %77, %72, %71 : vector<4x16x8xi1>, vector<4x16x8xf32>
    %79 = vector.extract_strided_slice %32 {offsets = [0, 0, 3], sizes = [4, 16, 8], strides = [1, 1, 1]} : vector<4x16x15xf32> to vector<4x16x8xf32>
    %c4_i32 = arith.constant 4 : i32
    %80 = vector.broadcast %c4_i32 : i32 to vector<16x1xi32>
    %81 = arith.cmpi eq, %49, %80 : vector<16x1xi32>
    %82 = vector.shape_cast %81 : vector<16x1xi1> to vector<1x16x1xi1>
    %83 = vector.shape_cast %82 : vector<1x16x1xi1> to vector<1x16x1xi1>
    %84 = vector.broadcast %83 : vector<1x16x1xi1> to vector<4x16x8xi1>
    %85 = arith.select %84, %79, %78 : vector<4x16x8xi1>, vector<4x16x8xf32>
    %86 = vector.extract_strided_slice %32 {offsets = [0, 0, 2], sizes = [4, 16, 8], strides = [1, 1, 1]} : vector<4x16x15xf32> to vector<4x16x8xf32>
    %c5_i32 = arith.constant 5 : i32
    %87 = vector.broadcast %c5_i32 : i32 to vector<16x1xi32>
    %88 = arith.cmpi eq, %49, %87 : vector<16x1xi32>
    %89 = vector.shape_cast %88 : vector<16x1xi1> to vector<1x16x1xi1>
    %90 = vector.shape_cast %89 : vector<1x16x1xi1> to vector<1x16x1xi1>
    %91 = vector.broadcast %90 : vector<1x16x1xi1> to vector<4x16x8xi1>
    %92 = arith.select %91, %86, %85 : vector<4x16x8xi1>, vector<4x16x8xf32>
    %93 = vector.extract_strided_slice %32 {offsets = [0, 0, 1], sizes = [4, 16, 8], strides = [1, 1, 1]} : vector<4x16x15xf32> to vector<4x16x8xf32>
    %c6_i32 = arith.constant 6 : i32
    %94 = vector.broadcast %c6_i32 : i32 to vector<16x1xi32>
    %95 = arith.cmpi eq, %49, %94 : vector<16x1xi32>
    %96 = vector.shape_cast %95 : vector<16x1xi1> to vector<1x16x1xi1>
    %97 = vector.shape_cast %96 : vector<1x16x1xi1> to vector<1x16x1xi1>
    %98 = vector.broadcast %97 : vector<1x16x1xi1> to vector<4x16x8xi1>
    %99 = arith.select %98, %93, %92 : vector<4x16x8xi1>, vector<4x16x8xf32>
    %100 = vector.extract_strided_slice %32 {offsets = [0, 0, 0], sizes = [4, 16, 8], strides = [1, 1, 1]} : vector<4x16x15xf32> to vector<4x16x8xf32>
    %c7_i32 = arith.constant 7 : i32
    %101 = vector.broadcast %c7_i32 : i32 to vector<16x1xi32>
    %102 = arith.cmpi eq, %49, %101 : vector<16x1xi32>
    %103 = vector.shape_cast %102 : vector<16x1xi1> to vector<1x16x1xi1>
    %104 = vector.shape_cast %103 : vector<1x16x1xi1> to vector<1x16x1xi1>
    %105 = vector.broadcast %104 : vector<1x16x1xi1> to vector<4x16x8xi1>
    %106 = arith.select %105, %100, %99 : vector<4x16x8xi1>, vector<4x16x8xf32>
    %107 = vector.shape_cast %106 : vector<4x16x8xf32> to vector<8x8x8xf32>
    %cst_27 = arith.constant 0.353553385 : f32
    %108 = vector.broadcast %cst_27 : f32 to vector<8x8x8xf32>
    %109 = arith.mulf %29, %108 : vector<8x8x8xf32>
    %110 = arith.addf %109, %107 : vector<8x8x8xf32>
    %cst_28 = arith.constant dense<0xFF800000> : vector<8x8xf32>
    %111 = vector.multi_reduction <maximumf>, %110, %cst_28 [2] : vector<8x8x8xf32> to vector<8x8xf32>
    %112 = vector.shape_cast %111 : vector<8x8xf32> to vector<8x8x1xf32>
    %113 = vector.broadcast %112 : vector<8x8x1xf32> to vector<8x8x8xf32>
    %114 = arith.subf %110, %113 : vector<8x8x8xf32>
    %115 = math.exp %114 : vector<8x8x8xf32>
    %cst_29 = arith.constant dense<0.000000e+00> : vector<8x8xf32>
    %116 = vector.multi_reduction <add>, %115, %cst_29 [2] : vector<8x8x8xf32> to vector<8x8xf32>
    %117 = vector.shape_cast %116 : vector<8x8xf32> to vector<8x8x1xf32>
    %118 = vector.broadcast %117 : vector<8x8x1xf32> to vector<8x8x8xf32>
    %119 = arith.divf %115, %118 : vector<8x8x8xf32>
    %120 = arith.truncf %119 : vector<8x8x8xf32> to vector<8x8x8xbf16>
    "tpu.trace_start"() <{level = 10 : i32, message = "gij,gjd->gid"}> : () -> ()
    %cst_30 = arith.constant dense<0.000000e+00> : vector<8x8x8xf32>
    %121 = tpu.matmul %120, %28, %cst_30 {dimension_numbers = #tpu.dot_dimension_numbers<[2], [1], [1], [2], [0, 0, 0, 1, 1, 2], [0], [0]>} : vector<8x8x8xbf16>, vector<8x8x8xbf16>, vector<8x8x8xf32> -> vector<8x8x8xf32>
    "tpu.trace_stop"() : () -> ()
    %122 = vector.shape_cast %121 : vector<8x8x8xf32> to vector<4x16x8xf32>
    %123 = arith.truncf %122 : vector<4x16x8xf32> to vector<4x16x8xbf16>
    %c0_31 = arith.constant 0 : index
    %c0_32 = arith.constant 0 : index
    %c0_33 = arith.constant 0 : index
    %c0_34 = arith.constant 0 : index
    %124 = vector.load %arg4[%c0_31, %c0_32, %c0_33, %c0_34] : memref<1x4x8x32xbf16, #tpu.memory_space<vmem>>, vector<1x4x8x32xbf16>
    %125 = vector.shape_cast %124 : vector<1x4x8x32xbf16> to vector<4x8x32xbf16>
    "tpu.trace_start"() <{level = 10 : i32, message = "hnd,hdc->hnc"}> : () -> ()
    %cst_35 = arith.constant dense<0.000000e+00> : vector<4x16x32xf32>
    %126 = tpu.matmul %123, %125, %cst_35 {dimension_numbers = #tpu.dot_dimension_numbers<[2], [1], [1], [2], [0, 0, 0, 1, 1, 2], [0], [0]>} : vector<4x16x8xbf16>, vector<4x8x32xbf16>, vector<4x16x32xf32> -> vector<4x16x32xf32>
    "tpu.trace_stop"() : () -> ()
    %cst_36 = arith.constant dense<0.000000e+00> : vector<16x32xf32>
    %127 = vector.multi_reduction <add>, %126, %cst_36 [0] : vector<4x16x32xf32> to vector<16x32xf32>
    %c0_37 = arith.constant 0 : index
    %c0_38 = arith.constant 0 : index
    %c0_39 = arith.constant 0 : index
    %128 = vector.load %arg5[%c0_37, %c0_38, %c0_39] : memref<1x1x32xf32, #tpu.memory_space<vmem>>, vector<1x1x32xf32>
    %129 = vector.shape_cast %128 : vector<1x1x32xf32> to vector<1x32xf32>
    %130 = vector.broadcast %129 : vector<1x32xf32> to vector<16x32xf32>
    %131 = arith.addf %127, %130 : vector<16x32xf32>
    %c0_40 = arith.constant 0 : index
    %c0_41 = arith.constant 0 : index
    %c0_42 = arith.constant 0 : index
    %132 = vector.load %arg6[%c0_40, %c0_41, %c0_42] : memref<1x1x32xf32, #tpu.memory_space<vmem>>, vector<1x1x32xf32>
    %133 = vector.shape_cast %132 : vector<1x1x32xf32> to vector<1x32xf32>
    %c0_43 = arith.constant 0 : index
    %c0_44 = arith.constant 0 : index
    %c0_45 = arith.constant 0 : index
    %134 = vector.load %arg7[%c0_43, %c0_44, %c0_45] : memref<1x1x32xf32, #tpu.memory_space<vmem>>, vector<1x1x32xf32>
    %135 = vector.shape_cast %134 : vector<1x1x32xf32> to vector<1x32xf32>
    %cst_46 = arith.constant dense<0.000000e+00> : vector<16xf32>
    %136 = vector.multi_reduction <add>, %131, %cst_46 [1] : vector<16x32xf32> to vector<16xf32>
    %137 = vector.shape_cast %136 : vector<16xf32> to vector<16x1xf32>
    %cst_47 = arith.constant 3.200000e+01 : f32
    %138 = vector.broadcast %cst_47 : f32 to vector<16x1xf32>
    %139 = arith.divf %137, %138 : vector<16x1xf32>
    %140 = vector.broadcast %139 : vector<16x1xf32> to vector<16x32xf32>
    %141 = arith.subf %131, %140 : vector<16x32xf32>
    %142 = arith.mulf %141, %141 : vector<16x32xf32>
    %cst_48 = arith.constant dense<0.000000e+00> : vector<16xf32>
    %143 = vector.multi_reduction <add>, %142, %cst_48 [1] : vector<16x32xf32> to vector<16xf32>
    %144 = vector.shape_cast %143 : vector<16xf32> to vector<16x1xf32>
    %cst_49 = arith.constant 3.200000e+01 : f32
    %145 = vector.broadcast %cst_49 : f32 to vector<16x1xf32>
    %146 = arith.divf %144, %145 : vector<16x1xf32>
    %cst_50 = arith.constant 9.99999974E-6 : f32
    %147 = vector.broadcast %cst_50 : f32 to vector<16x1xf32>
    %148 = arith.addf %146, %147 : vector<16x1xf32>
    %149 = math.rsqrt %148 : vector<16x1xf32>
    %150 = vector.broadcast %149 : vector<16x1xf32> to vector<16x32xf32>
    %151 = arith.mulf %141, %150 : vector<16x32xf32>
    %152 = vector.broadcast %133 : vector<1x32xf32> to vector<16x32xf32>
    %153 = arith.mulf %151, %152 : vector<16x32xf32>
    %154 = vector.broadcast %135 : vector<1x32xf32> to vector<16x32xf32>
    %155 = arith.addf %153, %154 : vector<16x32xf32>
    %156 = arith.addf %155, %3 : vector<16x32xf32>
    %157 = arith.truncf %156 : vector<16x32xf32> to vector<16x32xbf16>
    %c0_51 = arith.constant 0 : index
    %c0_52 = arith.constant 0 : index
    %c0_53 = arith.constant 0 : index
    %158 = vector.load %arg8[%c0_51, %c0_52, %c0_53] : memref<1x32x128xbf16, #tpu.memory_space<vmem>>, vector<1x32x128xbf16>
    %159 = vector.shape_cast %158 : vector<1x32x128xbf16> to vector<32x128xbf16>
    %cst_54 = arith.constant dense<0.000000e+00> : vector<16x128xf32>
    %160 = tpu.matmul %157, %159, %cst_54 {dimension_numbers = #tpu.dot_dimension_numbers<[1], [0], [0], [1], [0, 0, 1, 1], [], []>} : vector<16x32xbf16>, vector<32x128xbf16>, vector<16x128xf32> -> vector<16x128xf32>
    %c0_55 = arith.constant 0 : index
    %c0_56 = arith.constant 0 : index
    %c0_57 = arith.constant 0 : index
    %161 = vector.load %arg9[%c0_55, %c0_56, %c0_57] : memref<1x1x128xf32, #tpu.memory_space<vmem>>, vector<1x1x128xf32>
    %162 = vector.shape_cast %161 : vector<1x1x128xf32> to vector<1x128xf32>
    %163 = vector.broadcast %162 : vector<1x128xf32> to vector<16x128xf32>
    %164 = arith.addf %160, %163 : vector<16x128xf32>
    %cst_58 = arith.constant 5.000000e-01 : f32
    %165 = vector.broadcast %cst_58 : f32 to vector<16x128xf32>
    %166 = arith.mulf %165, %164 : vector<16x128xf32>
    %cst_59 = arith.constant 4.471500e-02 : f32
    %167 = vector.broadcast %cst_59 : f32 to vector<16x128xf32>
    %168 = arith.mulf %167, %164 : vector<16x128xf32>
    %169 = arith.mulf %168, %164 : vector<16x128xf32>
    %170 = arith.mulf %169, %164 : vector<16x128xf32>
    %171 = arith.addf %164, %170 : vector<16x128xf32>
    %cst_60 = arith.constant 0.797884583 : f32
    %172 = vector.broadcast %cst_60 : f32 to vector<16x128xf32>
    %173 = arith.mulf %172, %171 : vector<16x128xf32>
    %174 = math.tanh %173 : vector<16x128xf32>
    %cst_61 = arith.constant 1.000000e+00 : f32
    %175 = vector.broadcast %cst_61 : f32 to vector<16x128xf32>
    %176 = arith.addf %175, %174 : vector<16x128xf32>
    %177 = arith.mulf %166, %176 : vector<16x128xf32>
    %178 = arith.truncf %177 : vector<16x128xf32> to vector<16x128xbf16>
    %c0_62 = arith.constant 0 : index
    %c0_63 = arith.constant 0 : index
    %c0_64 = arith.constant 0 : index
    %179 = vector.load %arg10[%c0_62, %c0_63, %c0_64] : memref<1x128x32xbf16, #tpu.memory_space<vmem>>, vector<1x128x32xbf16>
    %180 = vector.shape_cast %179 : vector<1x128x32xbf16> to vector<128x32xbf16>
    %cst_65 = arith.constant dense<0.000000e+00> : vector<16x32xf32>
    %181 = tpu.matmul %178, %180, %cst_65 {dimension_numbers = #tpu.dot_dimension_numbers<[1], [0], [0], [1], [0, 0, 1, 1], [], []>} : vector<16x128xbf16>, vector<128x32xbf16>, vector<16x32xf32> -> vector<16x32xf32>
    %c0_66 = arith.constant 0 : index
    %c0_67 = arith.constant 0 : index
    %c0_68 = arith.constant 0 : index
    %182 = vector.load %arg11[%c0_66, %c0_67, %c0_68] : memref<1x1x32xf32, #tpu.memory_space<vmem>>, vector<1x1x32xf32>
    %183 = vector.shape_cast %182 : vector<1x1x32xf32> to vector<1x32xf32>
    %184 = vector.broadcast %183 : vector<1x32xf32> to vector<16x32xf32>
    %185 = arith.addf %181, %184 : vector<16x32xf32>
    %c0_69 = arith.constant 0 : index
    %c0_70 = arith.constant 0 : index
    %c0_71 = arith.constant 0 : index
    %186 = vector.load %arg12[%c0_69, %c0_70, %c0_71] : memref<1x1x32xf32, #tpu.memory_space<vmem>>, vector<1x1x32xf32>
    %187 = vector.shape_cast %186 : vector<1x1x32xf32> to vector<1x32xf32>
    %c0_72 = arith.constant 0 : index
    %c0_73 = arith.constant 0 : index
    %c0_74 = arith.constant 0 : index
    %188 = vector.load %arg13[%c0_72, %c0_73, %c0_74] : memref<1x1x32xf32, #tpu.memory_space<vmem>>, vector<1x1x32xf32>
    %189 = vector.shape_cast %188 : vector<1x1x32xf32> to vector<1x32xf32>
    %cst_75 = arith.constant dense<0.000000e+00> : vector<16xf32>
    %190 = vector.multi_reduction <add>, %185, %cst_75 [1] : vector<16x32xf32> to vector<16xf32>
    %191 = vector.shape_cast %190 : vector<16xf32> to vector<16x1xf32>
    %cst_76 = arith.constant 3.200000e+01 : f32
    %192 = vector.broadcast %cst_76 : f32 to vector<16x1xf32>
    %193 = arith.divf %191, %192 : vector<16x1xf32>
    %194 = vector.broadcast %193 : vector<16x1xf32> to vector<16x32xf32>
    %195 = arith.subf %185, %194 : vector<16x32xf32>
    %196 = arith.mulf %195, %195 : vector<16x32xf32>
    %cst_77 = arith.constant dense<0.000000e+00> : vector<16xf32>
    %197 = vector.multi_reduction <add>, %196, %cst_77 [1] : vector<16x32xf32> to vector<16xf32>
    %198 = vector.shape_cast %197 : vector<16xf32> to vector<16x1xf32>
    %cst_78 = arith.constant 3.200000e+01 : f32
    %199 = vector.broadcast %cst_78 : f32 to vector<16x1xf32>
    %200 = arith.divf %198, %199 : vector<16x1xf32>
    %cst_79 = arith.constant 9.99999974E-6 : f32
    %201 = vector.broadcast %cst_79 : f32 to vector<16x1xf32>
    %202 = arith.addf %200, %201 : vector<16x1xf32>
    %203 = math.rsqrt %202 : vector<16x1xf32>
    %204 = vector.broadcast %203 : vector<16x1xf32> to vector<16x32xf32>
    %205 = arith.mulf %195, %204 : vector<16x32xf32>
    %206 = vector.broadcast %187 : vector<1x32xf32> to vector<16x32xf32>
    %207 = arith.mulf %205, %206 : vector<16x32xf32>
    %208 = vector.broadcast %189 : vector<1x32xf32> to vector<16x32xf32>
    %209 = arith.addf %207, %208 : vector<16x32xf32>
    %210 = arith.addf %209, %156 : vector<16x32xf32>
    %c2_i32_80 = arith.constant 2 : i32
    %c0_i32_81 = arith.constant 0 : i32
    %211 = arith.cmpi eq, %c2_i32_80, %c0_i32_81 : i32
    %c1_i32_82 = arith.constant 1 : i32
    %212 = arith.select %211, %c1_i32_82, %c2_i32_80 : i32
    %213 = arith.remsi %arg1, %212 : i32
    %c0_i32_83 = arith.constant 0 : i32
    %214 = arith.cmpi ne, %213, %c0_i32_83 : i32
    %c0_i32_84 = arith.constant 0 : i32
    %215 = arith.cmpi slt, %213, %c0_i32_84 : i32
    %c0_i32_85 = arith.constant 0 : i32
    %216 = arith.cmpi slt, %212, %c0_i32_85 : i32
    %217 = arith.xori %215, %216 : i1
    %218 = arith.andi %217, %214 : i1
    %219 = arith.addi %213, %212 : i32
    %220 = arith.select %218, %219, %213 : i32
    %c0_i32_86 = arith.constant 0 : i32
    %221 = arith.cmpi eq, %220, %c0_i32_86 : i32
    %222 = vector.extract_strided_slice %210 {offsets = [4, 0], sizes = [12, 32], strides = [1, 1]} : vector<16x32xf32> to vector<12x32xf32>
    %223 = vector.extract_strided_slice %210 {offsets = [0, 0], sizes = [4, 32], strides = [1, 1]} : vector<16x32xf32> to vector<4x32xf32>
    %224 = tpu.concatenate %222, %223 in 0 : vector<12x32xf32>, vector<4x32xf32> -> vector<16x32xf32>
    %225 = vector.extract_strided_slice %210 {offsets = [12, 0], sizes = [4, 32], strides = [1, 1]} : vector<16x32xf32> to vector<4x32xf32>
    %226 = vector.extract_strided_slice %210 {offsets = [0, 0], sizes = [12, 32], strides = [1, 1]} : vector<16x32xf32> to vector<12x32xf32>
    %227 = tpu.concatenate %225, %226 in 0 : vector<4x32xf32>, vector<12x32xf32> -> vector<16x32xf32>
    %228 = arith.select %221, %224, %227 : vector<16x32xf32>
    %c0_87 = arith.constant 0 : index
    %c0_88 = arith.constant 0 : index
    %229 = vector.load %arg18[%c0_87, %c0_88] : memref<16x32xf32, #tpu.memory_space<vmem>>, vector<16x32xf32>
    tpu.vector_store %arg18[%c0_87, %c0_88], %228 {strides = array<i32>} : memref<16x32xf32, #tpu.memory_space<vmem>>, vector<16x32xf32>,
    %c0_89 = arith.constant 0 : index
    %c0_90 = arith.constant 0 : index
    %c0_91 = arith.constant 0 : index
    %230 = vector.load %arg17[%c0_89, %c0_90, %c0_91] : memref<1x16x32xf32, #tpu.memory_space<vmem>>, vector<1x16x32xf32>
    %231 = vector.shape_cast %230 : vector<1x16x32xf32> to vector<16x32xf32>
    %232 = vector.shape_cast %228 : vector<16x32xf32> to vector<1x16x32xf32>
    tpu.vector_store %arg17[%c0_89, %c0_90, %c0_91], %232 {strides = array<i32>} : memref<1x16x32xf32, #tpu.memory_space<vmem>>, vector<1x16x32xf32>,
    return
  }
  func.func @transform_0(%arg0: i32, %arg1: i32) -> (i32, i32, i32) {
    %c0_i32 = arith.constant 0 : i32
    %c0_i32_0 = arith.constant 0 : i32
    %c0_i32_1 = arith.constant 0 : i32
    return %arg0, %c0_i32, %c0_i32_0 : i32, i32, i32
  }
  func.func @transform_1(%arg0: i32, %arg1: i32) -> (i32, i32, i32, i32) {
    %c0_i32 = arith.constant 0 : i32
    %c0_i32_0 = arith.constant 0 : i32
    %c0_i32_1 = arith.constant 0 : i32
    %c0_i32_2 = arith.constant 0 : i32
    return %arg1, %c0_i32, %c0_i32_0, %c0_i32_1 : i32, i32, i32, i32
  }
  func.func @transform_2(%arg0: i32, %arg1: i32) -> (i32, i32, i32, i32) {
    %c0_i32 = arith.constant 0 : i32
    %c0_i32_0 = arith.constant 0 : i32
    %c0_i32_1 = arith.constant 0 : i32
    %c0_i32_2 = arith.constant 0 : i32
    return %arg1, %c0_i32, %c0_i32_0, %c0_i32_1 : i32, i32, i32, i32
  }
  func.func @transform_3(%arg0: i32, %arg1: i32) -> (i32, i32, i32) {
    %c0_i32 = arith.constant 0 : i32
    %c0_i32_0 = arith.constant 0 : i32
    %c0_i32_1 = arith.constant 0 : i32
    return %arg1, %c0_i32, %c0_i32_0 : i32, i32, i32
  }
  func.func @transform_4(%arg0: i32, %arg1: i32) -> (i32, i32, i32) {
    %c0_i32 = arith.constant 0 : i32
    %c0_i32_0 = arith.constant 0 : i32
    %c0_i32_1 = arith.constant 0 : i32
    return %arg1, %c0_i32, %c0_i32_0 : i32, i32, i32
  }
  func.func @transform_5(%arg0: i32, %arg1: i32) -> (i32, i32, i32) {
    %c0_i32 = arith.constant 0 : i32
    %c0_i32_0 = arith.constant 0 : i32
    %c0_i32_1 = arith.constant 0 : i32
    return %arg1, %c0_i32, %c0_i32_0 : i32, i32, i32
  }
  func.func @transform_6(%arg0: i32, %arg1: i32) -> (i32, i32, i32) {
    %c0_i32 = arith.constant 0 : i32
    %c0_i32_0 = arith.constant 0 : i32
    %c0_i32_1 = arith.constant 0 : i32
    return %arg1, %c0_i32, %c0_i32_0 : i32, i32, i32
  }
  func.func @transform_7(%arg0: i32, %arg1: i32) -> (i32, i32, i32) {
    %c0_i32 = arith.constant 0 : i32
    %c0_i32_0 = arith.constant 0 : i32
    %c0_i32_1 = arith.constant 0 : i32
    return %arg1, %c0_i32, %c0_i32_0 : i32, i32, i32
  }
  func.func @transform_8(%arg0: i32, %arg1: i32) -> (i32, i32, i32) {
    %c0_i32 = arith.constant 0 : i32
    %c0_i32_0 = arith.constant 0 : i32
    %c0_i32_1 = arith.constant 0 : i32
    return %arg1, %c0_i32, %c0_i32_0 : i32, i32, i32
  }
  func.func @transform_9(%arg0: i32, %arg1: i32) -> (i32, i32, i32) {
    %c0_i32 = arith.constant 0 : i32
    %c0_i32_0 = arith.constant 0 : i32
    %c0_i32_1 = arith.constant 0 : i32
    return %arg1, %c0_i32, %c0_i32_0 : i32, i32, i32
  }
  func.func @transform_10(%arg0: i32, %arg1: i32) -> (i32, i32, i32) {
    %c0_i32 = arith.constant 0 : i32
    %c0_i32_0 = arith.constant 0 : i32
    %c0_i32_1 = arith.constant 0 : i32
    return %arg1, %c0_i32, %c0_i32_0 : i32, i32, i32
  }
  func.func @transform_11(%arg0: i32, %arg1: i32) -> (i32, i32, i32) {
    %c0_i32 = arith.constant 0 : i32
    %c0_i32_0 = arith.constant 0 : i32
    %c0_i32_1 = arith.constant 0 : i32
    return %arg1, %c0_i32, %c0_i32_0 : i32, i32, i32
  }
  func.func @transform_12(%arg0: i32, %arg1: i32) -> (i32, i32, i32, i32) {
    %c0_i32 = arith.constant 0 : i32
    %c0_i32_0 = arith.constant 0 : i32
    %c0_i32_1 = arith.constant 0 : i32
    %c0_i32_2 = arith.constant 0 : i32
    return %arg1, %c0_i32, %c0_i32_0, %c0_i32_1 : i32, i32, i32, i32
  }
  func.func @transform_13(%arg0: i32, %arg1: i32) -> (i32, i32, i32, i32) {
    %c0_i32 = arith.constant 0 : i32
    %c0_i32_0 = arith.constant 0 : i32
    %c0_i32_1 = arith.constant 0 : i32
    %c0_i32_2 = arith.constant 0 : i32
    return %arg1, %c0_i32, %c0_i32_0, %c0_i32_1 : i32, i32, i32, i32
  }
  func.func @transform_14(%arg0: i32, %arg1: i32) -> (i32, i32, i32, i32) {
    %c0_i32 = arith.constant 0 : i32
    %c0_i32_0 = arith.constant 0 : i32
    %c0_i32_1 = arith.constant 0 : i32
    %c0_i32_2 = arith.constant 0 : i32
    return %arg1, %c0_i32, %c0_i32_0, %c0_i32_1 : i32, i32, i32, i32
  }
  func.func @transform_15(%arg0: i32, %arg1: i32) -> (i32, i32, i32) {
    %c0_i32 = arith.constant 0 : i32
    %c0_i32_0 = arith.constant 0 : i32
    %c0_i32_1 = arith.constant 0 : i32
    return %arg0, %c0_i32, %c0_i32_0 : i32, i32, i32
  }
}

</mosaic_0001>

<llo_original>
// kernel: basic_layer_forward.1
$region0: #{basic_layer_forward.1}
  #allocation0 [shape = 'u32[]', space=smem, size = 0x4, offset = 0x4, fixed_abs, tag = 'smem constant byte address 0x4 - core index']
  #allocation1 [shape = 'u32[72,128]{1,0:T(1,128)}', space=vmem, size = 0x9000, scoped, tag = 'internal scratch']
  #allocation2 [shape = 'f32[16,32]{1,0:T(8,128)}', space=vmem, size = 0x2000, scoped, tag = 'scratch operand']
  %s0 = inlined_call_operand.vmem [shape: f32[2,16,32], index: 0, kind: input, shape index: {}]
  %s1 = inlined_call_operand.vmem [shape: bf16[2,4,32,24], index: 1, kind: input, shape index: {}]
  %s2 = inlined_call_operand.vmem [shape: bf16[2,4,8,32], index: 2, kind: input, shape index: {}]
  %s3 = inlined_call_operand.vmem [shape: f32[2,1,32], index: 3, kind: input, shape index: {}]
  %s4 = inlined_call_operand.vmem [shape: f32[2,1,32], index: 4, kind: input, shape index: {}]
  %s5 = inlined_call_operand.vmem [shape: f32[2,1,32], index: 5, kind: input, shape index: {}]
  %s6 = inlined_call_operand.vmem [shape: bf16[2,32,128], index: 6, kind: input, shape index: {}]
  %s7 = inlined_call_operand.vmem [shape: f32[2,1,128], index: 7, kind: input, shape index: {}]
  %s8 = inlined_call_operand.vmem [shape: bf16[2,128,32], index: 8, kind: input, shape index: {}]
  %s9 = inlined_call_operand.vmem [shape: f32[2,1,32], index: 9, kind: input, shape index: {}]
  %s10 = inlined_call_operand.vmem [shape: f32[2,1,32], index: 10, kind: input, shape index: {}]
  %s11 = inlined_call_operand.vmem [shape: f32[2,1,32], index: 11, kind: input, shape index: {}]
  %s12 = inlined_call_operand.vmem [shape: f32[2,4,1,8], index: 12, kind: input, shape index: {}]
  %s13 = inlined_call_operand.vmem [shape: f32[2,4,1,8], index: 13, kind: input, shape index: {}]
  %s14 = inlined_call_operand.vmem [shape: bf16[2,4,15,8], index: 14, kind: input, shape index: {}]
  %s15 = inlined_call_operand.vmem [shape: f32[2,16,32], index: 15, kind: output, shape index: {}]
  %s16 = sld [smem:[#allocation0]]
  $region97: #{basic_layer_forward.1} parent=0
    _
  %s18 = ssub.s32 1, %s16
  %s19 = scalar_select 0, %s18, %s16
  loop: start=0, step=1, limit=6
  $region2: #{basic_layer_forward.1} parent=0 // loop_pre_header
    _
  $region3: #{basic_layer_forward.1} parent=0 // loop_header
    %s21 = sphi 0, %s25
    %p22 = scmp.ge.s32.totalorder %s21, 6
    %s28 = sphi 0, %s40
    %s29 = sphi 0, %s36
    %s30 = sphi 0, %s28
    %s31 = sphi 0, %s29
    %s32 = sphi 0, %s30
    %s33 = sphi 0, %s31
    %s43 = sphi 0, %s45
    %s46 = sphi 0, %s43
    %s47 = sphi 0, %s46
    %s63 = sphi 0, %s47
    %s69 = sphi 0, %s71
    %s72 = sphi 0, %s69
    %s73 = sphi 0, %s72
    %s89 = sphi 0, %s73
    %s95 = sphi 0, %s97
    %s98 = sphi 0, %s95
    %s99 = sphi 0, %s98
    %s115 = sphi 0, %s99
    %s121 = sphi 0, %s123
    %s124 = sphi 0, %s121
    %s125 = sphi 0, %s124
    %s141 = sphi 0, %s125
    %s147 = sphi 0, %s149
    %s150 = sphi 0, %s147
    %s151 = sphi 0, %s150
    %s167 = sphi 0, %s151
    %s173 = sphi 0, %s175
    %s176 = sphi 0, %s173
    %s177 = sphi 0, %s176
    %s193 = sphi 0, %s177
    %s199 = sphi 0, %s201
    %s202 = sphi 0, %s199
    %s203 = sphi 0, %s202
    %s219 = sphi 0, %s203
    %s225 = sphi 0, %s227
    %s228 = sphi 0, %s225
    %s229 = sphi 0, %s228
    %s245 = sphi 0, %s229
    %s251 = sphi 0, %s253
    %s254 = sphi 0, %s251
    %s255 = sphi 0, %s254
    %s271 = sphi 0, %s255
    %s277 = sphi 0, %s279
    %s280 = sphi 0, %s277
    %s281 = sphi 0, %s280
    %s297 = sphi 0, %s281
    %s303 = sphi 0, %s305
    %s306 = sphi 0, %s303
    %s307 = sphi 0, %s306
    %s323 = sphi 0, %s307
    %s329 = sphi 0, %s331
    %s332 = sphi 0, %s329
    %s333 = sphi 0, %s332
    %s349 = sphi 0, %s333
    %s355 = sphi 0, %s357
    %s358 = sphi 0, %s355
    %s359 = sphi 0, %s358
    %s375 = sphi 0, %s359
    %s381 = sphi 0, %s383
    %s384 = sphi 0, %s381
    %s385 = sphi 0, %s384
    %s401 = sphi 0, %s385
    %s407 = sphi 0, %s409
    %s410 = sphi 0, %s407
    %s411 = sphi 0, %s410
    %s427 = sphi 0, %s411
    %s433 = sphi 0, %s435
    %s436 = sphi 0, %s433
    %s437 = sphi 0, %s436
    %s453 = sphi 0, %s437
  $region4: #{basic_layer_forward.1} parent=0 // loop_header_branch
    %24 = sbr.rel (%p22) target = $region8
  $region5: #{basic_layer_forward.1} parent=0 // loop_body
    %s26 = ssub.s32 %s21, 1
    %s27 = ssub.s32 %s21, 2
    %s34 = sadd.s32 1, %s29
    %p35 = scmp.ge.s32.totalorder %s34, 2
    %s36 = scalar_select %p35, 0, %s34
    %s37 = sadd.s32 1, %s28
    %s38 = scalar_select %p35, %s37, %s28
    %p39 = scmp.ge.s32.totalorder %s38, 2
    %s40 = scalar_select %p39, 0, %s38
    %s41 = ssub.s32 %s28, %s40
    %p42 = scmp.eq.s32.totalorder %s41, 0
    %s44 = sadd.s32 %s43, 1
    %s45 = scalar_select %p42, %s43, %s44
    %p48 = pneg %p42
    %p49 = scmp.eq.s32.totalorder %s21, 3
    %p50 = por %p48, %p49
    %p51 = scmp.ne.s32.totalorder %s43, %s46
    %p52 = scmp.eq.s32.totalorder %s21, 0
    %p53 = por %p51, %p52
    %p54 = scmp.ne.s32.totalorder %s43, %s46
    %p55 = scmp.eq.s32.totalorder %s26, 3
    %p56 = por %p54, %p55
    %p57 = scmp.ne.s32.totalorder %s46, %s47
    %p58 = scmp.eq.s32.totalorder %s26, 0
    %p59 = por %p57, %p58
    %p60 = scmp.ne.s32.totalorder %s46, %s47
    %p61 = scmp.eq.s32.totalorder %s27, 3
    %p62 = por %p60, %p61
    %p64 = scmp.ne.s32.totalorder %s47, %s63
    %p65 = scmp.eq.s32.totalorder %s27, 0
    %p66 = por %p64, %p65
    %s67 = ssub.s32 %s29, %s36
    %p68 = scmp.eq.s32.totalorder %s67, 0
    %s70 = sadd.s32 %s69, 1
    %s71 = scalar_select %p68, %s69, %s70
    %p74 = pneg %p68
    %p75 = scmp.eq.s32.totalorder %s21, 3
    %p76 = por %p74, %p75
    %p77 = scmp.ne.s32.totalorder %s69, %s72
    %p78 = scmp.eq.s32.totalorder %s21, 0
    %p79 = por %p77, %p78
    %p80 = scmp.ne.s32.totalorder %s69, %s72
    %p81 = scmp.eq.s32.totalorder %s26, 3
    %p82 = por %p80, %p81
    %p83 = scmp.ne.s32.totalorder %s72, %s73
    %p84 = scmp.eq.s32.totalorder %s26, 0
    %p85 = por %p83, %p84
    %p86 = scmp.ne.s32.totalorder %s72, %s73
    %p87 = scmp.eq.s32.totalorder %s27, 3
    %p88 = por %p86, %p87
    %p90 = scmp.ne.s32.totalorder %s73, %s89
    %p91 = scmp.eq.s32.totalorder %s27, 0
    %p92 = por %p90, %p91
    %s93 = ssub.s32 %s29, %s36
    %p94 = scmp.eq.s32.totalorder %s93, 0
    %s96 = sadd.s32 %s95, 1
    %s97 = scalar_select %p94, %s95, %s96
    %p100 = pneg %p94
    %p101 = scmp.eq.s32.totalorder %s21, 3
    %p102 = por %p100, %p101
    %p103 = scmp.ne.s32.totalorder %s95, %s98
    %p104 = scmp.eq.s32.totalorder %s21, 0
    %p105 = por %p103, %p104
    %p106 = scmp.ne.s32.totalorder %s95, %s98
    %p107 = scmp.eq.s32.totalorder %s26, 3
    %p108 = por %p106, %p107
    %p109 = scmp.ne.s32.totalorder %s98, %s99
    %p110 = scmp.eq.s32.totalorder %s26, 0
    %p111 = por %p109, %p110
    %p112 = scmp.ne.s32.totalorder %s98, %s99
    %p113 = scmp.eq.s32.totalorder %s27, 3
    %p114 = por %p112, %p113
    %p116 = scmp.ne.s32.totalorder %s99, %s115
    %p117 = scmp.eq.s32.totalorder %s27, 0
    %p118 = por %p116, %p117
    %s119 = ssub.s32 %s29, %s36
    %p120 = scmp.eq.s32.totalorder %s119, 0
    %s122 = sadd.s32 %s121, 1
    %s123 = scalar_select %p120, %s121, %s122
    %p126 = pneg %p120
    %p127 = scmp.eq.s32.totalorder %s21, 3
    %p128 = por %p126, %p127
    %p129 = scmp.ne.s32.totalorder %s121, %s124
    %p130 = scmp.eq.s32.totalorder %s21, 0
    %p131 = por %p129, %p130
    %p132 = scmp.ne.s32.totalorder %s121, %s124
    %p133 = scmp.eq.s32.totalorder %s26, 3
    %p134 = por %p132, %p133
    %p135 = scmp.ne.s32.totalorder %s124, %s125
    %p136 = scmp.eq.s32.totalorder %s26, 0
    %p137 = por %p135, %p136
    %p138 = scmp.ne.s32.totalorder %s124, %s125
    %p139 = scmp.eq.s32.totalorder %s27, 3
    %p140 = por %p138, %p139
    %p142 = scmp.ne.s32.totalorder %s125, %s141
    %p143 = scmp.eq.s32.totalorder %s27, 0
    %p144 = por %p142, %p143
    %s145 = ssub.s32 %s29, %s36
    %p146 = scmp.eq.s32.totalorder %s145, 0
    %s148 = sadd.s32 %s147, 1
    %s149 = scalar_select %p146, %s147, %s148
    %p152 = pneg %p146
    %p153 = scmp.eq.s32.totalorder %s21, 3
    %p154 = por %p152, %p153
    %p155 = scmp.ne.s32.totalorder %s147, %s150
    %p156 = scmp.eq.s32.totalorder %s21, 0
    %p157 = por %p155, %p156
    %p158 = scmp.ne.s32.totalorder %s147, %s150
    %p159 = scmp.eq.s32.totalorder %s26, 3
    %p160 = por %p158, %p159
    %p161 = scmp.ne.s32.totalorder %s150, %s151
    %p162 = scmp.eq.s32.totalorder %s26, 0
    %p163 = por %p161, %p162
    %p164 = scmp.ne.s32.totalorder %s150, %s151
    %p165 = scmp.eq.s32.totalorder %s27, 3
    %p166 = por %p164, %p165
    %p168 = scmp.ne.s32.totalorder %s151, %s167
    %p169 = scmp.eq.s32.totalorder %s27, 0
    %p170 = por %p168, %p169
    %s171 = ssub.s32 %s29, %s36
    %p172 = scmp.eq.s32.totalorder %s171, 0
    %s174 = sadd.s32 %s173, 1
    %s175 = scalar_select %p172, %s173, %s174
    %p178 = pneg %p172
    %p179 = scmp.eq.s32.totalorder %s21, 3
    %p180 = por %p178, %p179
    %p181 = scmp.ne.s32.totalorder %s173, %s176
    %p182 = scmp.eq.s32.totalorder %s21, 0
    %p183 = por %p181, %p182
    %p184 = scmp.ne.s32.totalorder %s173, %s176
    %p185 = scmp.eq.s32.totalorder %s26, 3
    %p186 = por %p184, %p185
    %p187 = scmp.ne.s32.totalorder %s176, %s177
    %p188 = scmp.eq.s32.totalorder %s26, 0
    %p189 = por %p187, %p188
    %p190 = scmp.ne.s32.totalorder %s176, %s177
    %p191 = scmp.eq.s32.totalorder %s27, 3
    %p192 = por %p190, %p191
    %p194 = scmp.ne.s32.totalorder %s177, %s193
    %p195 = scmp.eq.s32.totalorder %s27, 0
    %p196 = por %p194, %p195
    %s197 = ssub.s32 %s29, %s36
    %p198 = scmp.eq.s32.totalorder %s197, 0
    %s200 = sadd.s32 %s199, 1
    %s201 = scalar_select %p198, %s199, %s200
    %p204 = pneg %p198
    %p205 = scmp.eq.s32.totalorder %s21, 3
    %p206 = por %p204, %p205
    %p207 = scmp.ne.s32.totalorder %s199, %s202
    %p208 = scmp.eq.s32.totalorder %s21, 0
    %p209 = por %p207, %p208
    %p210 = scmp.ne.s32.totalorder %s199, %s202
    %p211 = scmp.eq.s32.totalorder %s26, 3
    %p212 = por %p210, %p211
    %p213 = scmp.ne.s32.totalorder %s202, %s203
    %p214 = scmp.eq.s32.totalorder %s26, 0
    %p215 = por %p213, %p214
    %p216 = scmp.ne.s32.totalorder %s202, %s203
    %p217 = scmp.eq.s32.totalorder %s27, 3
    %p218 = por %p216, %p217
    %p220 = scmp.ne.s32.totalorder %s203, %s219
    %p221 = scmp.eq.s32.totalorder %s27, 0
    %p222 = por %p220, %p221
    %s223 = ssub.s32 %s29, %s36
    %p224 = scmp.eq.s32.totalorder %s223, 0
    %s226 = sadd.s32 %s225, 1
    %s227 = scalar_select %p224, %s225, %s226
    %p230 = pneg %p224
    %p231 = scmp.eq.s32.totalorder %s21, 3
    %p232 = por %p230, %p231
    %p233 = scmp.ne.s32.totalorder %s225, %s228
    %p234 = scmp.eq.s32.totalorder %s21, 0
    %p235 = por %p233, %p234
    %p236 = scmp.ne.s32.totalorder %s225, %s228
    %p237 = scmp.eq.s32.totalorder %s26, 3
    %p238 = por %p236, %p237
    %p239 = scmp.ne.s32.totalorder %s228, %s229
    %p240 = scmp.eq.s32.totalorder %s26, 0
    %p241 = por %p239, %p240
    %p242 = scmp.ne.s32.totalorder %s228, %s229
    %p243 = scmp.eq.s32.totalorder %s27, 3
    %p244 = por %p242, %p243
    %p246 = scmp.ne.s32.totalorder %s229, %s245
    %p247 = scmp.eq.s32.totalorder %s27, 0
    %p248 = por %p246, %p247
    %s249 = ssub.s32 %s29, %s36
    %p250 = scmp.eq.s32.totalorder %s249, 0
    %s252 = sadd.s32 %s251, 1
    %s253 = scalar_select %p250, %s251, %s252
    %p256 = pneg %p250
    %p257 = scmp.eq.s32.totalorder %s21, 3
    %p258 = por %p256, %p257
    %p259 = scmp.ne.s32.totalorder %s251, %s254
    %p260 = scmp.eq.s32.totalorder %s21, 0
    %p261 = por %p259, %p260
    %p262 = scmp.ne.s32.totalorder %s251, %s254
    %p263 = scmp.eq.s32.totalorder %s26, 3
    %p264 = por %p262, %p263
    %p265 = scmp.ne.s32.totalorder %s254, %s255
    %p266 = scmp.eq.s32.totalorder %s26, 0
    %p267 = por %p265, %p266
    %p268 = scmp.ne.s32.totalorder %s254, %s255
    %p269 = scmp.eq.s32.totalorder %s27, 3
    %p270 = por %p268, %p269
    %p272 = scmp.ne.s32.totalorder %s255, %s271
    %p273 = scmp.eq.s32.totalorder %s27, 0
    %p274 = por %p272, %p273
    %s275 = ssub.s32 %s29, %s36
    %p276 = scmp.eq.s32.totalorder %s275, 0
    %s278 = sadd.s32 %s277, 1
    %s279 = scalar_select %p276, %s277, %s278
    %p282 = pneg %p276
    %p283 = scmp.eq.s32.totalorder %s21, 3
    %p284 = por %p282, %p283
    %p285 = scmp.ne.s32.totalorder %s277, %s280
    %p286 = scmp.eq.s32.totalorder %s21, 0
    %p287 = por %p285, %p286
    %p288 = scmp.ne.s32.totalorder %s277, %s280
    %p289 = scmp.eq.s32.totalorder %s26, 3
    %p290 = por %p288, %p289
    %p291 = scmp.ne.s32.totalorder %s280, %s281
    %p292 = scmp.eq.s32.totalorder %s26, 0
    %p293 = por %p291, %p292
    %p294 = scmp.ne.s32.totalorder %s280, %s281
    %p295 = scmp.eq.s32.totalorder %s27, 3
    %p296 = por %p294, %p295
    %p298 = scmp.ne.s32.totalorder %s281, %s297
    %p299 = scmp.eq.s32.totalorder %s27, 0
    %p300 = por %p298, %p299
    %s301 = ssub.s32 %s29, %s36
    %p302 = scmp.eq.s32.totalorder %s301, 0
    %s304 = sadd.s32 %s303, 1
    %s305 = scalar_select %p302, %s303, %s304
    %p308 = pneg %p302
    %p309 = scmp.eq.s32.totalorder %s21, 3
    %p310 = por %p308, %p309
    %p311 = scmp.ne.s32.totalorder %s303, %s306
    %p312 = scmp.eq.s32.totalorder %s21, 0
    %p313 = por %p311, %p312
    %p314 = scmp.ne.s32.totalorder %s303, %s306
    %p315 = scmp.eq.s32.totalorder %s26, 3
    %p316 = por %p314, %p315
    %p317 = scmp.ne.s32.totalorder %s306, %s307
    %p318 = scmp.eq.s32.totalorder %s26, 0
    %p319 = por %p317, %p318
    %p320 = scmp.ne.s32.totalorder %s306, %s307
    %p321 = scmp.eq.s32.totalorder %s27, 3
    %p322 = por %p320, %p321
    %p324 = scmp.ne.s32.totalorder %s307, %s323
    %p325 = scmp.eq.s32.totalorder %s27, 0
    %p326 = por %p324, %p325
    %s327 = ssub.s32 %s29, %s36
    %p328 = scmp.eq.s32.totalorder %s327, 0
    %s330 = sadd.s32 %s329, 1
    %s331 = scalar_select %p328, %s329, %s330
    %p334 = pneg %p328
    %p335 = scmp.eq.s32.totalorder %s21, 3
    %p336 = por %p334, %p335
    %p337 = scmp.ne.s32.totalorder %s329, %s332
    %p338 = scmp.eq.s32.totalorder %s21, 0
    %p339 = por %p337, %p338
    %p340 = scmp.ne.s32.totalorder %s329, %s332
    %p341 = scmp.eq.s32.totalorder %s26, 3
    %p342 = por %p340, %p341
    %p343 = scmp.ne.s32.totalorder %s332, %s333
    %p344 = scmp.eq.s32.totalorder %s26, 0
    %p345 = por %p343, %p344
    %p346 = scmp.ne.s32.totalorder %s332, %s333
    %p347 = scmp.eq.s32.totalorder %s27, 3
    %p348 = por %p346, %p347
    %p350 = scmp.ne.s32.totalorder %s333, %s349
    %p351 = scmp.eq.s32.totalorder %s27, 0
    %p352 = por %p350, %p351
    %s353 = ssub.s32 %s29, %s36
    %p354 = scmp.eq.s32.totalorder %s353, 0
    %s356 = sadd.s32 %s355, 1
    %s357 = scalar_select %p354, %s355, %s356
    %p360 = pneg %p354
    %p361 = scmp.eq.s32.totalorder %s21, 3
    %p362 = por %p360, %p361
    %p363 = scmp.ne.s32.totalorder %s355, %s358
    %p364 = scmp.eq.s32.totalorder %s21, 0
    %p365 = por %p363, %p364
    %p366 = scmp.ne.s32.totalorder %s355, %s358
    %p367 = scmp.eq.s32.totalorder %s26, 3
    %p368 = por %p366, %p367
    %p369 = scmp.ne.s32.totalorder %s358, %s359
    %p370 = scmp.eq.s32.totalorder %s26, 0
    %p371 = por %p369, %p370
    %p372 = scmp.ne.s32.totalorder %s358, %s359
    %p373 = scmp.eq.s32.totalorder %s27, 3
    %p374 = por %p372, %p373
    %p376 = scmp.ne.s32.totalorder %s359, %s375
    %p377 = scmp.eq.s32.totalorder %s27, 0
    %p378 = por %p376, %p377
    %s379 = ssub.s32 %s29, %s36
    %p380 = scmp.eq.s32.totalorder %s379, 0
    %s382 = sadd.s32 %s381, 1
    %s383 = scalar_select %p380, %s381, %s382
    %p386 = pneg %p380
    %p387 = scmp.eq.s32.totalorder %s21, 3
    %p388 = por %p386, %p387
    %p389 = scmp.ne.s32.totalorder %s381, %s384
    %p390 = scmp.eq.s32.totalorder %s21, 0
    %p391 = por %p389, %p390
    %p392 = scmp.ne.s32.totalorder %s381, %s384
    %p393 = scmp.eq.s32.totalorder %s26, 3
    %p394 = por %p392, %p393
    %p395 = scmp.ne.s32.totalorder %s384, %s385
    %p396 = scmp.eq.s32.totalorder %s26, 0
    %p397 = por %p395, %p396
    %p398 = scmp.ne.s32.totalorder %s384, %s385
    %p399 = scmp.eq.s32.totalorder %s27, 3
    %p400 = por %p398, %p399
    %p402 = scmp.ne.s32.totalorder %s385, %s401
    %p403 = scmp.eq.s32.totalorder %s27, 0
    %p404 = por %p402, %p403
    %s405 = ssub.s32 %s29, %s36
    %p406 = scmp.eq.s32.totalorder %s405, 0
    %s408 = sadd.s32 %s407, 1
    %s409 = scalar_select %p406, %s407, %s408
    %p412 = pneg %p406
    %p413 = scmp.eq.s32.totalorder %s21, 3
    %p414 = por %p412, %p413
    %p415 = scmp.ne.s32.totalorder %s407, %s410
    %p416 = scmp.eq.s32.totalorder %s21, 0
    %p417 = por %p415, %p416
    %p418 = scmp.ne.s32.totalorder %s407, %s410
    %p419 = scmp.eq.s32.totalorder %s26, 3
    %p420 = por %p418, %p419
    %p421 = scmp.ne.s32.totalorder %s410, %s411
    %p422 = scmp.eq.s32.totalorder %s26, 0
    %p423 = por %p421, %p422
    %p424 = scmp.ne.s32.totalorder %s410, %s411
    %p425 = scmp.eq.s32.totalorder %s27, 3
    %p426 = por %p424, %p425
    %p428 = scmp.ne.s32.totalorder %s411, %s427
    %p429 = scmp.eq.s32.totalorder %s27, 0
    %p430 = por %p428, %p429
    %s431 = ssub.s32 %s28, %s40
    %p432 = scmp.eq.s32.totalorder %s431, 0
    %s434 = sadd.s32 %s433, 1
    %s435 = scalar_select %p432, %s433, %s434
    %p438 = pneg %p432
    %p439 = scmp.eq.s32.totalorder %s21, 3
    %p440 = por %p438, %p439
    %p441 = scmp.ne.s32.totalorder %s433, %s436
    %p442 = scmp.eq.s32.totalorder %s21, 0
    %p443 = por %p441, %p442
    %p444 = scmp.ne.s32.totalorder %s433, %s436
    %p445 = scmp.eq.s32.totalorder %s26, 3
    %p446 = por %p444, %p445
    %p447 = scmp.ne.s32.totalorder %s436, %s437
    %p448 = scmp.eq.s32.totalorder %s26, 0
    %p449 = por %p447, %p448
    %p450 = scmp.ne.s32.totalorder %s436, %s437
    %p451 = scmp.eq.s32.totalorder %s27, 3
    %p452 = por %p450, %p451
    %p454 = scmp.ne.s32.totalorder %s437, %s453
    %p455 = scmp.eq.s32.totalorder %s27, 0
    %p456 = por %p454, %p455
    %p457 = scmp.le.s32.totalorder 1, %s21
    %p458 = scmp.lt.s32.totalorder %s21, 5
    %p459 = pnand %p457, %p458
    %p460 = pneg %p459
    // Predicated region
    $region9: #{basic_layer_forward.1} parent=5 // pred_check
      _
    $region10: #{basic_layer_forward.1} parent=5 // pred_check_branch
      %462 = sbr.rel (%p459) target = $region12
    $region11: #{basic_layer_forward.1} parent=5 // pred_region
      %s463 = ssub.s32 %s21, 1
    $region12: #{basic_layer_forward.1} parent=5 // pred_fallthru
      _
    %p464 = scmp.lt.s32.totalorder %s21, 4
    // Predicated region
    $region13: #{basic_layer_forward.1} parent=5 // pred_check
      %p465 = pneg %p464
    $region14: #{basic_layer_forward.1} parent=5 // pred_check_branch
      %467 = sbr.rel (%p465) target = $region16
    $region15: #{basic_layer_forward.1} parent=5 // pred_region
      // Predicated region
      $region17: #{basic_layer_forward.1} parent=15 // pred_check
        %p468 = pneg %p53
      $region18: #{basic_layer_forward.1} parent=15 // pred_check_branch
        %470 = sbr.rel (%p468) target = $region20
      $region19: #{basic_layer_forward.1} parent=15 // pred_region
        %p471 = scmp.lt.s32.totalorder %s28, 1
        %s472 = scalar_select %p471, %s28, 1
        %s473 = smul.addr %s472, 2
        %s474 = smul.addr %s473, 8
        %s475 = scalar_lea.vmem %s0, %s474
      $region20: #{basic_layer_forward.1} parent=15 // pred_fallthru
        _
      // Predicated region
      $region21: #{basic_layer_forward.1} parent=15 // pred_check
        %p476 = pneg %p79
      $region22: #{basic_layer_forward.1} parent=15 // pred_check_branch
        %478 = sbr.rel (%p476) target = $region24
      $region23: #{basic_layer_forward.1} parent=15 // pred_region
        %p479 = scmp.lt.s32.totalorder %s29, 1
        %s480 = scalar_select %p479, %s29, 1
        %s481 = smul.addr %s480, 16
        %s482 = smul.addr %s481, 4
        %s483 = scalar_lea.vmem %s1, %s482
      $region24: #{basic_layer_forward.1} parent=15 // pred_fallthru
        _
      // Predicated region
      $region25: #{basic_layer_forward.1} parent=15 // pred_check
        %p484 = pneg %p105
      $region26: #{basic_layer_forward.1} parent=15 // pred_check_branch
        %486 = sbr.rel (%p484) target = $region28
      $region27: #{basic_layer_forward.1} parent=15 // pred_region
        %p487 = scmp.lt.s32.totalorder %s29, 1
        %s488 = scalar_select %p487, %s29, 1
        %s489 = smul.addr %s488, 4
        %s490 = smul.addr %s489, 4
        %s491 = scalar_lea.vmem %s2, %s490
      $region28: #{basic_layer_forward.1} parent=15 // pred_fallthru
        _
      // Predicated region
      $region29: #{basic_layer_forward.1} parent=15 // pred_check
        %p492 = pneg %p131
      $region30: #{basic_layer_forward.1} parent=15 // pred_check_branch
        %494 = sbr.rel (%p492) target = $region32
      $region31: #{basic_layer_forward.1} parent=15 // pred_region
        %p495 = scmp.lt.s32.totalorder %s29, 1
        %s496 = scalar_select %p495, %s29, 1
        %s497 = scalar_lea.vmem %s3, %s496
      $region32: #{basic_layer_forward.1} parent=15 // pred_fallthru
        _
      // Predicated region
      $region33: #{basic_layer_forward.1} parent=15 // pred_check
        %p498 = pneg %p157
      $region34: #{basic_layer_forward.1} parent=15 // pred_check_branch
        %500 = sbr.rel (%p498) target = $region36
      $region35: #{basic_layer_forward.1} parent=15 // pred_region
        %p501 = scmp.lt.s32.totalorder %s29, 1
        %s502 = scalar_select %p501, %s29, 1
        %s503 = scalar_lea.vmem %s4, %s502
      $region36: #{basic_layer_forward.1} parent=15 // pred_fallthru
        _
      // Predicated region
      $region37: #{basic_layer_forward.1} parent=15 // pred_check
        %p504 = pneg %p183
      $region38: #{basic_layer_forward.1} parent=15 // pred_check_branch
        %506 = sbr.rel (%p504) target = $region40
      $region39: #{basic_layer_forward.1} parent=15 // pred_region
        %p507 = scmp.lt.s32.totalorder %s29, 1
        %s508 = scalar_select %p507, %s29, 1
        %s509 = scalar_lea.vmem %s5, %s508
      $region40: #{basic_layer_forward.1} parent=15 // pred_fallthru
        _
      // Predicated region
      $region41: #{basic_layer_forward.1} parent=15 // pred_check
        %p510 = pneg %p209
      $region42: #{basic_layer_forward.1} parent=15 // pred_check_branch
        %512 = sbr.rel (%p510) target = $region44
      $region43: #{basic_layer_forward.1} parent=15 // pred_region
        %p513 = scmp.lt.s32.totalorder %s29, 1
        %s514 = scalar_select %p513, %s29, 1
        %s515 = smul.addr %s514, 4
        %s516 = smul.addr %s515, 4
        %s517 = scalar_lea.vmem %s6, %s516
      $region44: #{basic_layer_forward.1} parent=15 // pred_fallthru
        _
      // Predicated region
      $region45: #{basic_layer_forward.1} parent=15 // pred_check
        %p518 = pneg %p235
      $region46: #{basic_layer_forward.1} parent=15 // pred_check_branch
        %520 = sbr.rel (%p518) target = $region48
      $region47: #{basic_layer_forward.1} parent=15 // pred_region
        %p521 = scmp.lt.s32.totalorder %s29, 1
        %s522 = scalar_select %p521, %s29, 1
        %s523 = scalar_lea.vmem %s7, %s522
      $region48: #{basic_layer_forward.1} parent=15 // pred_fallthru
        _
      // Predicated region
      $region49: #{basic_layer_forward.1} parent=15 // pred_check
        %p524 = pneg %p261
      $region50: #{basic_layer_forward.1} parent=15 // pred_check_branch
        %526 = sbr.rel (%p524) target = $region52
      $region51: #{basic_layer_forward.1} parent=15 // pred_region
        %p527 = scmp.lt.s32.totalorder %s29, 1
        %s528 = scalar_select %p527, %s29, 1
        %s529 = smul.addr %s528, 16
        %s530 = smul.addr %s529, 4
        %s531 = scalar_lea.vmem %s8, %s530
      $region52: #{basic_layer_forward.1} parent=15 // pred_fallthru
        _
      // Predicated region
      $region53: #{basic_layer_forward.1} parent=15 // pred_check
        %p532 = pneg %p287
      $region54: #{basic_layer_forward.1} parent=15 // pred_check_branch
        %534 = sbr.rel (%p532) target = $region56
      $region55: #{basic_layer_forward.1} parent=15 // pred_region
        %p535 = scmp.lt.s32.totalorder %s29, 1
        %s536 = scalar_select %p535, %s29, 1
        %s537 = scalar_lea.vmem %s9, %s536
      $region56: #{basic_layer_forward.1} parent=15 // pred_fallthru
        _
      // Predicated region
      $region57: #{basic_layer_forward.1} parent=15 // pred_check
        %p538 = pneg %p313
      $region58: #{basic_layer_forward.1} parent=15 // pred_check_branch
        %540 = sbr.rel (%p538) target = $region60
      $region59: #{basic_layer_forward.1} parent=15 // pred_region
        %p541 = scmp.lt.s32.totalorder %s29, 1
        %s542 = scalar_select %p541, %s29, 1
        %s543 = scalar_lea.vmem %s10, %s542
      $region60: #{basic_layer_forward.1} parent=15 // pred_fallthru
        _
      // Predicated region
      $region61: #{basic_layer_forward.1} parent=15 // pred_check
        %p544 = pneg %p339
      $region62: #{basic_layer_forward.1} parent=15 // pred_check_branch
        %546 = sbr.rel (%p544) target = $region64
      $region63: #{basic_layer_forward.1} parent=15 // pred_region
        %p547 = scmp.lt.s32.totalorder %s29, 1
        %s548 = scalar_select %p547, %s29, 1
        %s549 = scalar_lea.vmem %s11, %s548
      $region64: #{basic_layer_forward.1} parent=15 // pred_fallthru
        _
      // Predicated region
      $region65: #{basic_layer_forward.1} parent=15 // pred_check
        %p550 = pneg %p365
      $region66: #{basic_layer_forward.1} parent=15 // pred_check_branch
        %552 = sbr.rel (%p550) target = $region68
      $region67: #{basic_layer_forward.1} parent=15 // pred_region
        %p553 = scmp.lt.s32.totalorder %s29, 1
        %s554 = scalar_select %p553, %s29, 1
        %s555 = smul.addr %s554, 4
        %s556 = scalar_lea.vmem %s12, %s555
      $region68: #{basic_layer_forward.1} parent=15 // pred_fallthru
        _
      // Predicated region
      $region69: #{basic_layer_forward.1} parent=15 // pred_check
        %p557 = pneg %p391
      $region70: #{basic_layer_forward.1} parent=15 // pred_check_branch
        %559 = sbr.rel (%p557) target = $region72
      $region71: #{basic_layer_forward.1} parent=15 // pred_region
        %p560 = scmp.lt.s32.totalorder %s29, 1
        %s561 = scalar_select %p560, %s29, 1
        %s562 = smul.addr %s561, 4
        %s563 = scalar_lea.vmem %s13, %s562
      $region72: #{basic_layer_forward.1} parent=15 // pred_fallthru
        _
      // Predicated region
      $region73: #{basic_layer_forward.1} parent=15 // pred_check
        %p564 = pneg %p417
      $region74: #{basic_layer_forward.1} parent=15 // pred_check_branch
        %566 = sbr.rel (%p564) target = $region76
      $region75: #{basic_layer_forward.1} parent=15 // pred_region
        %p567 = scmp.lt.s32.totalorder %s29, 1
        %s568 = scalar_select %p567, %s29, 1
        %s569 = smul.addr %s568, 8
        %s570 = smul.addr %s569, 4
        %s571 = scalar_lea.vmem %s14, %s570
      $region76: #{basic_layer_forward.1} parent=15 // pred_fallthru
        _
    $region16: #{basic_layer_forward.1} parent=5 // pred_fallthru
      _
    %p572 = scmp.le.s32.totalorder 1, %s21
    %p573 = scmp.lt.s32.totalorder %s21, 5
    %p574 = pnand %p572, %p573
    %p575 = pneg %p574
    // Predicated region
    $region77: #{basic_layer_forward.1} parent=5 // pred_check
      _
    $region78: #{basic_layer_forward.1} parent=5 // pred_check_branch
      %577 = sbr.rel (%p574) target = $region80
    $region79: #{basic_layer_forward.1} parent=5 // pred_region
      %s578 = ssub.s32 %s21, 1
      %p579 = scmp.lt.s32.totalorder %s30, 1
      %s580 = scalar_select %p579, %s30, 1
      %s581 = smul.addr %s580, 2
      %s582 = smul.addr %s581, 8
      %s583 = scalar_lea.vmem %s0, %s582
      %p584 = pneg %p59
      %p585 = pneg %p56
      %p586 = scmp.lt.s32.totalorder %s31, 1
      %s587 = scalar_select %p586, %s31, 1
      %s588 = smul.addr %s587, 16
      %s589 = smul.addr %s588, 4
      %s590 = scalar_lea.vmem %s1, %s589
      %p591 = pneg %p85
      %p592 = pneg %p82
      %p593 = scmp.lt.s32.totalorder %s31, 1
      %s594 = scalar_select %p593, %s31, 1
      %s595 = smul.addr %s594, 4
      %s596 = smul.addr %s595, 4
      %s597 = scalar_lea.vmem %s2, %s596
      %p598 = pneg %p111
      %p599 = pneg %p108
      %p600 = scmp.lt.s32.totalorder %s31, 1
      %s601 = scalar_select %p600, %s31, 1
      %s602 = scalar_lea.vmem %s3, %s601
      %p603 = pneg %p137
      %p604 = pneg %p134
      %p605 = scmp.lt.s32.totalorder %s31, 1
      %s606 = scalar_select %p605, %s31, 1
      %s607 = scalar_lea.vmem %s4, %s606
      %p608 = pneg %p163
      %p609 = pneg %p160
      %p610 = scmp.lt.s32.totalorder %s31, 1
      %s611 = scalar_select %p610, %s31, 1
      %s612 = scalar_lea.vmem %s5, %s611
      %p613 = pneg %p189
      %p614 = pneg %p186
      %p615 = scmp.lt.s32.totalorder %s31, 1
      %s616 = scalar_select %p615, %s31, 1
      %s617 = smul.addr %s616, 4
      %s618 = smul.addr %s617, 4
      %s619 = scalar_lea.vmem %s6, %s618
      %p620 = pneg %p215
      %p621 = pneg %p212
      %p622 = scmp.lt.s32.totalorder %s31, 1
      %s623 = scalar_select %p622, %s31, 1
      %s624 = scalar_lea.vmem %s7, %s623
      %p625 = pneg %p241
      %p626 = pneg %p238
      %p627 = scmp.lt.s32.totalorder %s31, 1
      %s628 = scalar_select %p627, %s31, 1
      %s629 = smul.addr %s628, 16
      %s630 = smul.addr %s629, 4
      %s631 = scalar_lea.vmem %s8, %s630
      %p632 = pneg %p267
      %p633 = pneg %p264
      %p634 = scmp.lt.s32.totalorder %s31, 1
      %s635 = scalar_select %p634, %s31, 1
      %s636 = scalar_lea.vmem %s9, %s635
      %p637 = pneg %p293
      %p638 = pneg %p290
      %p639 = scmp.lt.s32.totalorder %s31, 1
      %s640 = scalar_select %p639, %s31, 1
      %s641 = scalar_lea.vmem %s10, %s640
      %p642 = pneg %p319
      %p643 = pneg %p316
      %p644 = scmp.lt.s32.totalorder %s31, 1
      %s645 = scalar_select %p644, %s31, 1
      %s646 = scalar_lea.vmem %s11, %s645
      %p647 = pneg %p345
      %p648 = pneg %p342
      %p649 = scmp.lt.s32.totalorder %s31, 1
      %s650 = scalar_select %p649, %s31, 1
      %s651 = smul.addr %s650, 4
      %s652 = scalar_lea.vmem %s12, %s651
      %p653 = pneg %p371
      %p654 = pneg %p368
      %p655 = scmp.lt.s32.totalorder %s31, 1
      %s656 = scalar_select %p655, %s31, 1
      %s657 = smul.addr %s656, 4
      %s658 = scalar_lea.vmem %s13, %s657
      %p659 = pneg %p397
      %p660 = pneg %p394
      %p661 = scmp.lt.s32.totalorder %s31, 1
      %s662 = scalar_select %p661, %s31, 1
      %s663 = smul.addr %s662, 8
      %s664 = smul.addr %s663, 4
      %s665 = scalar_lea.vmem %s14, %s664
      %p666 = pneg %p423
      %p667 = pneg %p420
      %p668 = pneg %p449
      %p669 = pneg %p446
      %p670 = scmp.lt.s32.totalorder %s30, 1
      %s671 = scalar_select %p670, %s30, 1
      %s672 = smul.addr %s671, 2
      %s673 = smul.addr %s672, 8
      %s674 = scalar_lea.vmem %s15, %s673
      %p675 = scmp.lt.s32.totalorder %s30, 1
      %s676 = scalar_select %p675, %s30, 1
      %s677 = smul.addr %s676, 2
      %s678 = smul.addr %s677, 8
      %s679 = scalar_lea.vmem %s0, %s678
      %p680 = scmp.lt.s32.totalorder %s31, 1
      %s681 = scalar_select %p680, %s31, 1
      %s682 = smul.addr %s681, 16
      %s683 = smul.addr %s682, 4
      %s684 = scalar_lea.vmem %s1, %s683
      %p685 = scmp.lt.s32.totalorder %s31, 1
      %s686 = scalar_select %p685, %s31, 1
      %s687 = smul.addr %s686, 4
      %s688 = smul.addr %s687, 4
      %s689 = scalar_lea.vmem %s2, %s688
      %p690 = scmp.lt.s32.totalorder %s31, 1
      %s691 = scalar_select %p690, %s31, 1
      %s692 = scalar_lea.vmem %s3, %s691
      %p693 = scmp.lt.s32.totalorder %s31, 1
      %s694 = scalar_select %p693, %s31, 1
      %s695 = scalar_lea.vmem %s4, %s694
      %p696 = scmp.lt.s32.totalorder %s31, 1
      %s697 = scalar_select %p696, %s31, 1
      %s698 = scalar_lea.vmem %s5, %s697
      %p699 = scmp.lt.s32.totalorder %s31, 1
      %s700 = scalar_select %p699, %s31, 1
      %s701 = smul.addr %s700, 4
      %s702 = smul.addr %s701, 4
      %s703 = scalar_lea.vmem %s6, %s702
      %p704 = scmp.lt.s32.totalorder %s31, 1
      %s705 = scalar_select %p704, %s31, 1
      %s706 = scalar_lea.vmem %s7, %s705
      %p707 = scmp.lt.s32.totalorder %s31, 1
      %s708 = scalar_select %p707, %s31, 1
      %s709 = smul.addr %s708, 16
      %s710 = smul.addr %s709, 4
      %s711 = scalar_lea.vmem %s8, %s710
      %p712 = scmp.lt.s32.totalorder %s31, 1
      %s713 = scalar_select %p712, %s31, 1
      %s714 = scalar_lea.vmem %s9, %s713
      %p715 = scmp.lt.s32.totalorder %s31, 1
      %s716 = scalar_select %p715, %s31, 1
      %s717 = scalar_lea.vmem %s10, %s716
      %p718 = scmp.lt.s32.totalorder %s31, 1
      %s719 = scalar_select %p718, %s31, 1
      %s720 = scalar_lea.vmem %s11, %s719
      %p721 = scmp.lt.s32.totalorder %s31, 1
      %s722 = scalar_select %p721, %s31, 1
      %s723 = smul.addr %s722, 4
      %s724 = scalar_lea.vmem %s12, %s723
      %p725 = scmp.lt.s32.totalorder %s31, 1
      %s726 = scalar_select %p725, %s31, 1
      %s727 = smul.addr %s726, 4
      %s728 = scalar_lea.vmem %s13, %s727
      %p729 = scmp.lt.s32.totalorder %s31, 1
      %s730 = scalar_select %p729, %s31, 1
      %s731 = smul.addr %s730, 8
      %s732 = smul.addr %s731, 4
      %s733 = scalar_lea.vmem %s14, %s732
      %p734 = scmp.lt.s32.totalorder %s30, 1
      %s735 = scalar_select %p734, %s30, 1
      %s736 = smul.addr %s735, 2
      %s737 = smul.addr %s736, 8
      %s738 = scalar_lea.vmem %s15, %s737
      %p740 = scmp.eq.s32.totalorder %s31, 0
      // Predicated region
      $region81: #{basic_layer_forward.1} parent=79 // pred_check
        %p741 = pneg %p740
      $region82: #{basic_layer_forward.1} parent=79 // pred_check_branch
        %743 = sbr.rel (%p741) target = $region84
      $region83: #{basic_layer_forward.1} parent=79 // pred_region
        %v744 = vld [vmem:[%s679] sm:$0xff]
        %v745 = vld [vmem:[%s679 + $0x8] sm:$0xff]
        %vm746 = vcmask 261120
        %747 = vst.msk [vmem:[#allocation2] sm:$0xff] %vm746, %v744
        %748 = vst.msk [vmem:[#allocation2 + $0x8] sm:$0xff] %vm746, %v745
      $region84: #{basic_layer_forward.1} parent=79 // pred_fallthru
        _
      %v749 = vld [vmem:[#allocation2] sm:$0xff]
      %v750 = vld [vmem:[#allocation2 + $0x8] sm:$0xff]
      %v751 = vpack.c.bf16 %v749, %v749
      %v752 = vpack.c.bf16 %v750, %v750
      %v753 = vld [vmem:[%s684] sm:$0xf]
      %v754 = vld [vmem:[%s684 + $0x4] sm:$0xf]
      %v755 = vld [vmem:[%s684 + $0x8] sm:$0xf]
      %v756 = vld [vmem:[%s684 + $0xc] sm:$0xf]
      %v757 = vld [vmem:[%s684 + $0x10] sm:$0xf]
      %v758 = vld [vmem:[%s684 + $0x14] sm:$0xf]
      %v759 = vld [vmem:[%s684 + $0x18] sm:$0xf]
      %v760 = vld [vmem:[%s684 + $0x1c] sm:$0xf]
      %v761 = vld [vmem:[%s684 + $0x20] sm:$0xf]
      %v762 = vld [vmem:[%s684 + $0x24] sm:$0xf]
      %v763 = vld [vmem:[%s684 + $0x28] sm:$0xf]
      %v764 = vld [vmem:[%s684 + $0x2c] sm:$0xf]
      %v765 = vld [vmem:[%s684 + $0x30] sm:$0xf]
      %v766 = vld [vmem:[%s684 + $0x34] sm:$0xf]
      %v767 = vld [vmem:[%s684 + $0x38] sm:$0xf]
      %v768 = vld [vmem:[%s684 + $0x3c] sm:$0xf]
      %v771 = vunpack.c.l.b16 %v751
      %v772 = vunpack.c.l.b16 %v752
      %v773 = vpack.c.b16 %v772, %v771
      %v778 = vunpack.c.l.b16 %v753
      %v779 = vunpack.c.l.b16 %v754
      %v780 = vunpack.c.l.b16 %v755
      %v781 = vunpack.c.l.b16 %v756
      %v782 = vpack.c.b16 %v779, %v778
      %v783 = vpack.c.b16 %v781, %v780
      %vm786 = vcmask 261120
      %v788 = vsel %vm786, %v773, 0
      %790 = vmatpush.bf16.msra.mxu0 0
      %791 = vmatpush.bf16.msra.mxu0 0
      %792 = vmatpush.bf16.msra.mxu0 0
      %793 = vmatpush.bf16.msra.mxu0 0
      %794 = vmatpush.bf16.msra.mxu0 0
      %795 = vmatpush.bf16.msra.mxu0 0
      %796 = vmatpush.bf16.msra.mxu0 %v783
      %797 = vmatpush.bf16.msra.mxu0 %v782
      %798 = vmatmul.bf16.gmra.mxu0 %v788
      %v799 = vpop.f32.mrf.mxu0
      %v800 = vadd.f32 0.0, %v799
      %v801 = vpop.f32.mrf.mxu0
      %v802 = vadd.f32 0.0, %v801
      %803 = vdwg.mxu0
      %v808 = vunpack.c.l.b16 %v757
      %v809 = vunpack.c.l.b16 %v758
      %v810 = vunpack.c.l.b16 %v759
      %v811 = vunpack.c.l.b16 %v760
      %v812 = vpack.c.b16 %v809, %v808
      %v813 = vpack.c.b16 %v811, %v810
      %816 = vmatpush.bf16.msra.mxu0 0
      %817 = vmatpush.bf16.msra.mxu0 0
      %818 = vmatpush.bf16.msra.mxu0 0
      %819 = vmatpush.bf16.msra.mxu0 0
      %820 = vmatpush.bf16.msra.mxu0 0
      %821 = vmatpush.bf16.msra.mxu0 0
      %822 = vmatpush.bf16.msra.mxu0 %v813
      %823 = vmatpush.bf16.msra.mxu0 %v812
      %824 = vmatmul.bf16.gmra.mxu0 %v788
      %v825 = vpop.f32.mrf.mxu0
      %v826 = vadd.f32 0.0, %v825
      %v827 = vpop.f32.mrf.mxu0
      %v828 = vadd.f32 0.0, %v827
      %829 = vdwg.mxu0
      %v834 = vunpack.c.l.b16 %v761
      %v835 = vunpack.c.l.b16 %v762
      %v836 = vunpack.c.l.b16 %v763
      %v837 = vunpack.c.l.b16 %v764
      %v838 = vpack.c.b16 %v835, %v834
      %v839 = vpack.c.b16 %v837, %v836
      %842 = vmatpush.bf16.msra.mxu0 0
      %843 = vmatpush.bf16.msra.mxu0 0
      %844 = vmatpush.bf16.msra.mxu0 0
      %845 = vmatpush.bf16.msra.mxu0 0
      %846 = vmatpush.bf16.msra.mxu0 0
      %847 = vmatpush.bf16.msra.mxu0 0
      %848 = vmatpush.bf16.msra.mxu0 %v839
      %849 = vmatpush.bf16.msra.mxu0 %v838
      %850 = vmatmul.bf16.gmra.mxu0 %v788
      %v851 = vpop.f32.mrf.mxu0
      %v852 = vadd.f32 0.0, %v851
      %v853 = vpop.f32.mrf.mxu0
      %v854 = vadd.f32 0.0, %v853
      %855 = vdwg.mxu0
      %v860 = vunpack.c.l.b16 %v765
      %v861 = vunpack.c.l.b16 %v766
      %v862 = vunpack.c.l.b16 %v767
      %v863 = vunpack.c.l.b16 %v768
      %v864 = vpack.c.b16 %v861, %v860
      %v865 = vpack.c.b16 %v863, %v862
      %868 = vmatpush.bf16.msra.mxu0 0
      %869 = vmatpush.bf16.msra.mxu0 0
      %870 = vmatpush.bf16.msra.mxu0 0
      %871 = vmatpush.bf16.msra.mxu0 0
      %872 = vmatpush.bf16.msra.mxu0 0
      %873 = vmatpush.bf16.msra.mxu0 0
      %874 = vmatpush.bf16.msra.mxu0 %v865
      %875 = vmatpush.bf16.msra.mxu0 %v864
      %876 = vmatmul.bf16.gmra.mxu0 %v788
      %v877 = vpop.f32.mrf.mxu0
      %v878 = vadd.f32 0.0, %v877
      %v879 = vpop.f32.mrf.mxu0
      %v880 = vadd.f32 0.0, %v879
      %881 = vdwg.mxu0
      %v882 = vld [vmem:[%s724] sm:$0x1]
      %v883 = vld [vmem:[%s724 + $0x1] sm:$0x1]
      %v884 = vld [vmem:[%s724 + $0x2] sm:$0x1]
      %v885 = vld [vmem:[%s724 + $0x3] sm:$0x1]
      %v890 = vperm.slane %v882, 0
      %v891 = vperm.slane %v883, 0
      %v892 = vperm.slane %v884, 0
      %v893 = vperm.slane %v885, 0
      %v898 = vadd.f32 %v800, %v890
      %v899 = vadd.f32 %v802, %v890
      %v900 = vadd.f32 %v826, %v891
      %v901 = vadd.f32 %v828, %v891
      %v902 = vadd.f32 %v852, %v892
      %v903 = vadd.f32 %v854, %v892
      %v904 = vadd.f32 %v878, %v893
      %v905 = vadd.f32 %v880, %v893
      %v906 = vpack.c.bf16 %v898, %v898
      %v907 = vpack.c.bf16 %v899, %v899
      %v908 = vpack.c.bf16 %v900, %v900
      %v909 = vpack.c.bf16 %v901, %v901
      %v910 = vpack.c.bf16 %v902, %v902
      %v911 = vpack.c.bf16 %v903, %v903
      %v912 = vpack.c.bf16 %v904, %v904
      %v913 = vpack.c.bf16 %v905, %v905
      %v914 = vld [vmem:[%s728] sm:$0x1]
      %v915 = vld [vmem:[%s728 + $0x1] sm:$0x1]
      %v916 = vld [vmem:[%s728 + $0x2] sm:$0x1]
      %v917 = vld [vmem:[%s728 + $0x3] sm:$0x1]
      %v922 = vperm.slane %v914, 0
      %v923 = vperm.slane %v915, 0
      %v924 = vperm.slane %v916, 0
      %v925 = vperm.slane %v917, 0
      %v930 = vadd.f32 %v800, %v922
      %v931 = vadd.f32 %v802, %v922
      %v932 = vadd.f32 %v826, %v923
      %v933 = vadd.f32 %v828, %v923
      %v934 = vadd.f32 %v852, %v924
      %v935 = vadd.f32 %v854, %v924
      %v936 = vadd.f32 %v878, %v925
      %v937 = vadd.f32 %v880, %v925
      %v938 = vpack.c.bf16 %v930, %v930
      %v939 = vpack.c.bf16 %v931, %v931
      %v940 = vpack.c.bf16 %v932, %v932
      %v941 = vpack.c.bf16 %v933, %v933
      %v942 = vpack.c.bf16 %v934, %v934
      %v943 = vpack.c.bf16 %v935, %v935
      %v944 = vpack.c.bf16 %v936, %v936
      %v945 = vpack.c.bf16 %v937, %v937
      %v946 = vpack.c.bf16 %v800, %v800
      %v947 = vpack.c.bf16 %v802, %v802
      %v948 = vpack.c.bf16 %v826, %v826
      %v949 = vpack.c.bf16 %v828, %v828
      %v950 = vpack.c.bf16 %v852, %v852
      %v951 = vpack.c.bf16 %v854, %v854
      %v952 = vpack.c.bf16 %v878, %v878
      %v953 = vpack.c.bf16 %v880, %v880
      %v955 = vunpack.c.l.b16 %v946
      %v956 = vpack.c.b16 %v955, %v955
      %957 = vrot.lane.b32.xlu0 %v956, 120
      %v958 = vpop.permute.xlu0 %957
      %vm959 = vcmask 64512
      %v961 = vsel %vm959, %v906, 0
      %v964 = vsel %vm959, %v958, 0
      %966 = vmatpush.bf16.xpose.msra.mxu0 0
      %967 = vmatpush.bf16.xpose.msra.mxu0 0
      %968 = vmatpush.bf16.xpose.msra.mxu0 0
      %969 = vmatpush.bf16.xpose.msra.mxu0 0
      %970 = vmatpush.bf16.xpose.msra.mxu0 0
      %971 = vmatpush.bf16.xpose.msra.mxu0 0
      %972 = vmatpush.bf16.xpose.msra.mxu0 0
      %973 = vmatpush.bf16.xpose.msra.mxu0 %v964
      %974 = vmatmul.bf16.gmra.mxu0 %v961
      %v975 = vpop.f32.mrf.mxu0
      %v976 = vadd.f32 0.0, %v975
      %v977 = vpop.f32.mrf.mxu0
      %978 = vdwg.mxu0
      %v980 = vunpack.c.l.b16 %v947
      %v981 = vpack.c.b16 %v980, %v980
      %982 = vrot.lane.b32.xlu0 %v981, 120
      %v983 = vpop.permute.xlu0 %982
      %v985 = vsel %vm959, %v907, 0
      %v988 = vsel %vm959, %v983, 0
      %990 = vmatpush.bf16.xpose.msra.mxu0 0
      %991 = vmatpush.bf16.xpose.msra.mxu0 0
      %992 = vmatpush.bf16.xpose.msra.mxu0 0
      %993 = vmatpush.bf16.xpose.msra.mxu0 0
      %994 = vmatpush.bf16.xpose.msra.mxu0 0
      %995 = vmatpush.bf16.xpose.msra.mxu0 0
      %996 = vmatpush.bf16.xpose.msra.mxu0 0
      %997 = vmatpush.bf16.xpose.msra.mxu0 %v988
      %998 = vmatmul.bf16.gmra.mxu0 %v985
      %v999 = vpop.f32.mrf.mxu0
      %v1000 = vadd.f32 0.0, %v999
      %v1001 = vpop.f32.mrf.mxu0
      %1002 = vdwg.mxu0
      %v1004 = vunpack.c.l.b16 %v948
      %v1005 = vpack.c.b16 %v1004, %v1004
      %1006 = vrot.lane.b32.xlu0 %v1005, 120
      %v1007 = vpop.permute.xlu0 %1006
      %v1009 = vsel %vm959, %v908, 0
      %v1012 = vsel %vm959, %v1007, 0
      %1014 = vmatpush.bf16.xpose.msra.mxu0 0
      %1015 = vmatpush.bf16.xpose.msra.mxu0 0
      %1016 = vmatpush.bf16.xpose.msra.mxu0 0
      %1017 = vmatpush.bf16.xpose.msra.mxu0 0
      %1018 = vmatpush.bf16.xpose.msra.mxu0 0
      %1019 = vmatpush.bf16.xpose.msra.mxu0 0
      %1020 = vmatpush.bf16.xpose.msra.mxu0 0
      %1021 = vmatpush.bf16.xpose.msra.mxu0 %v1012
      %1022 = vmatmul.bf16.gmra.mxu0 %v1009
      %v1023 = vpop.f32.mrf.mxu0
      %v1024 = vadd.f32 0.0, %v1023
      %v1025 = vpop.f32.mrf.mxu0
      %1026 = vdwg.mxu0
      %v1028 = vunpack.c.l.b16 %v949
      %v1029 = vpack.c.b16 %v1028, %v1028
      %1030 = vrot.lane.b32.xlu0 %v1029, 120
      %v1031 = vpop.permute.xlu0 %1030
      %v1033 = vsel %vm959, %v909, 0
      %v1036 = vsel %vm959, %v1031, 0
      %1038 = vmatpush.bf16.xpose.msra.mxu0 0
      %1039 = vmatpush.bf16.xpose.msra.mxu0 0
      %1040 = vmatpush.bf16.xpose.msra.mxu0 0
      %1041 = vmatpush.bf16.xpose.msra.mxu0 0
      %1042 = vmatpush.bf16.xpose.msra.mxu0 0
      %1043 = vmatpush.bf16.xpose.msra.mxu0 0
      %1044 = vmatpush.bf16.xpose.msra.mxu0 0
      %1045 = vmatpush.bf16.xpose.msra.mxu0 %v1036
      %1046 = vmatmul.bf16.gmra.mxu0 %v1033
      %v1047 = vpop.f32.mrf.mxu0
      %v1048 = vadd.f32 0.0, %v1047
      %v1049 = vpop.f32.mrf.mxu0
      %1050 = vdwg.mxu0
      %v1052 = vunpack.c.l.b16 %v950
      %v1053 = vpack.c.b16 %v1052, %v1052
      %1054 = vrot.lane.b32.xlu0 %v1053, 120
      %v1055 = vpop.permute.xlu0 %1054
      %v1057 = vsel %vm959, %v910, 0
      %v1060 = vsel %vm959, %v1055, 0
      %1062 = vmatpush.bf16.xpose.msra.mxu0 0
      %1063 = vmatpush.bf16.xpose.msra.mxu0 0
      %1064 = vmatpush.bf16.xpose.msra.mxu0 0
      %1065 = vmatpush.bf16.xpose.msra.mxu0 0
      %1066 = vmatpush.bf16.xpose.msra.mxu0 0
      %1067 = vmatpush.bf16.xpose.msra.mxu0 0
      %1068 = vmatpush.bf16.xpose.msra.mxu0 0
      %1069 = vmatpush.bf16.xpose.msra.mxu0 %v1060
      %1070 = vmatmul.bf16.gmra.mxu0 %v1057
      %v1071 = vpop.f32.mrf.mxu0
      %v1072 = vadd.f32 0.0, %v1071
      %v1073 = vpop.f32.mrf.mxu0
      %1074 = vdwg.mxu0
      %v1076 = vunpack.c.l.b16 %v951
      %v1077 = vpack.c.b16 %v1076, %v1076
      %1078 = vrot.lane.b32.xlu0 %v1077, 120
      %v1079 = vpop.permute.xlu0 %1078
      %v1081 = vsel %vm959, %v911, 0
      %v1084 = vsel %vm959, %v1079, 0
      %1086 = vmatpush.bf16.xpose.msra.mxu0 0
      %1087 = vmatpush.bf16.xpose.msra.mxu0 0
      %1088 = vmatpush.bf16.xpose.msra.mxu0 0
      %1089 = vmatpush.bf16.xpose.msra.mxu0 0
      %1090 = vmatpush.bf16.xpose.msra.mxu0 0
      %1091 = vmatpush.bf16.xpose.msra.mxu0 0
      %1092 = vmatpush.bf16.xpose.msra.mxu0 0
      %1093 = vmatpush.bf16.xpose.msra.mxu0 %v1084
      %1094 = vmatmul.bf16.gmra.mxu0 %v1081
      %v1095 = vpop.f32.mrf.mxu0
      %v1096 = vadd.f32 0.0, %v1095
      %v1097 = vpop.f32.mrf.mxu0
      %1098 = vdwg.mxu0
      %v1100 = vunpack.c.l.b16 %v952
      %v1101 = vpack.c.b16 %v1100, %v1100
      %1102 = vrot.lane.b32.xlu0 %v1101, 120
      %v1103 = vpop.permute.xlu0 %1102
      %v1105 = vsel %vm959, %v912, 0
      %v1108 = vsel %vm959, %v1103, 0
      %1110 = vmatpush.bf16.xpose.msra.mxu0 0
      %1111 = vmatpush.bf16.xpose.msra.mxu0 0
      %1112 = vmatpush.bf16.xpose.msra.mxu0 0
      %1113 = vmatpush.bf16.xpose.msra.mxu0 0
      %1114 = vmatpush.bf16.xpose.msra.mxu0 0
      %1115 = vmatpush.bf16.xpose.msra.mxu0 0
      %1116 = vmatpush.bf16.xpose.msra.mxu0 0
      %1117 = vmatpush.bf16.xpose.msra.mxu0 %v1108
      %1118 = vmatmul.bf16.gmra.mxu0 %v1105
      %v1119 = vpop.f32.mrf.mxu0
      %v1120 = vadd.f32 0.0, %v1119
      %v1121 = vpop.f32.mrf.mxu0
      %1122 = vdwg.mxu0
      %v1124 = vunpack.c.l.b16 %v953
      %v1125 = vpack.c.b16 %v1124, %v1124
      %1126 = vrot.lane.b32.xlu0 %v1125, 120
      %v1127 = vpop.permute.xlu0 %1126
      %v1129 = vsel %vm959, %v913, 0
      %v1132 = vsel %vm959, %v1127, 0
      %1134 = vmatpush.bf16.xpose.msra.mxu0 0
      %1135 = vmatpush.bf16.xpose.msra.mxu0 0
      %1136 = vmatpush.bf16.xpose.msra.mxu0 0
      %1137 = vmatpush.bf16.xpose.msra.mxu0 0
      %1138 = vmatpush.bf16.xpose.msra.mxu0 0
      %1139 = vmatpush.bf16.xpose.msra.mxu0 0
      %1140 = vmatpush.bf16.xpose.msra.mxu0 0
      %1141 = vmatpush.bf16.xpose.msra.mxu0 %v1132
      %1142 = vmatmul.bf16.gmra.mxu0 %v1129
      %v1143 = vpop.f32.mrf.mxu0
      %v1144 = vadd.f32 0.0, %v1143
      %v1145 = vpop.f32.mrf.mxu0
      %1146 = vdwg.mxu0
      %v1147 = vld [vmem:[%s733] sm:$0xf]
      %v1148 = vld [vmem:[%s733 + $0x4] sm:$0xf]
      %v1149 = vld [vmem:[%s733 + $0x8] sm:$0xf]
      %v1150 = vld [vmem:[%s733 + $0xc] sm:$0xf]
      %v1151 = vld [vmem:[%s733 + $0x10] sm:$0xf]
      %v1152 = vld [vmem:[%s733 + $0x14] sm:$0xf]
      %v1153 = vld [vmem:[%s733 + $0x18] sm:$0xf]
      %v1154 = vld [vmem:[%s733 + $0x1c] sm:$0xf]
      %v1157 = vunpack.c.l.b16 %v938
      %v1158 = vunpack.c.l.b16 %v939
      %v1159 = vpack.c.b16 %v1158, %v1157
      %v1162 = vunpack.c.l.b16 %v1147
      %v1163 = vunpack.c.l.b16 %v1148
      %v1164 = vpack.c.b16 %v1163, %v1162
      %v1166 = vsel %vm959, %v1159, 0
      %v1169 = vsel %vm959, %v1164, 0
      %1171 = vmatpush.bf16.xpose.msra.mxu0 0
      %1172 = vmatpush.bf16.xpose.msra.mxu0 0
      %1173 = vmatpush.bf16.xpose.msra.mxu0 0
      %1174 = vmatpush.bf16.xpose.msra.mxu0 0
      %1175 = vmatpush.bf16.xpose.msra.mxu0 0
      %1176 = vmatpush.bf16.xpose.msra.mxu0 0
      %1177 = vmatpush.bf16.xpose.msra.mxu0 0
      %1178 = vmatpush.bf16.xpose.msra.mxu0 %v1169
      %1179 = vmatmul.bf16.gmra.mxu0 %v1166
      %v1180 = vpop.f32.mrf.mxu0
      %v1181 = vadd.f32 0.0, %v1180
      %v1182 = vpop.f32.mrf.mxu0
      %v1183 = vadd.f32 0.0, %v1182
      %1184 = vdwg.mxu0
      %v1187 = vunpack.c.l.b16 %v940
      %v1188 = vunpack.c.l.b16 %v941
      %v1189 = vpack.c.b16 %v1188, %v1187
      %v1192 = vunpack.c.l.b16 %v1149
      %v1193 = vunpack.c.l.b16 %v1150
      %v1194 = vpack.c.b16 %v1193, %v1192
      %v1196 = vsel %vm959, %v1189, 0
      %v1199 = vsel %vm959, %v1194, 0
      %1201 = vmatpush.bf16.xpose.msra.mxu0 0
      %1202 = vmatpush.bf16.xpose.msra.mxu0 0
      %1203 = vmatpush.bf16.xpose.msra.mxu0 0
      %1204 = vmatpush.bf16.xpose.msra.mxu0 0
      %1205 = vmatpush.bf16.xpose.msra.mxu0 0
      %1206 = vmatpush.bf16.xpose.msra.mxu0 0
      %1207 = vmatpush.bf16.xpose.msra.mxu0 0
      %1208 = vmatpush.bf16.xpose.msra.mxu0 %v1199
      %1209 = vmatmul.bf16.gmra.mxu0 %v1196
      %v1210 = vpop.f32.mrf.mxu0
      %v1211 = vadd.f32 0.0, %v1210
      %v1212 = vpop.f32.mrf.mxu0
      %v1213 = vadd.f32 0.0, %v1212
      %1214 = vdwg.mxu0
      %v1217 = vunpack.c.l.b16 %v942
      %v1218 = vunpack.c.l.b16 %v943
      %v1219 = vpack.c.b16 %v1218, %v1217
      %v1222 = vunpack.c.l.b16 %v1151
      %v1223 = vunpack.c.l.b16 %v1152
      %v1224 = vpack.c.b16 %v1223, %v1222
      %v1226 = vsel %vm959, %v1219, 0
      %v1229 = vsel %vm959, %v1224, 0
      %1231 = vmatpush.bf16.xpose.msra.mxu0 0
      %1232 = vmatpush.bf16.xpose.msra.mxu0 0
      %1233 = vmatpush.bf16.xpose.msra.mxu0 0
      %1234 = vmatpush.bf16.xpose.msra.mxu0 0
      %1235 = vmatpush.bf16.xpose.msra.mxu0 0
      %1236 = vmatpush.bf16.xpose.msra.mxu0 0
      %1237 = vmatpush.bf16.xpose.msra.mxu0 0
      %1238 = vmatpush.bf16.xpose.msra.mxu0 %v1229
      %1239 = vmatmul.bf16.gmra.mxu0 %v1226
      %v1240 = vpop.f32.mrf.mxu0
      %v1241 = vadd.f32 0.0, %v1240
      %v1242 = vpop.f32.mrf.mxu0
      %v1243 = vadd.f32 0.0, %v1242
      %1244 = vdwg.mxu0
      %v1247 = vunpack.c.l.b16 %v944
      %v1248 = vunpack.c.l.b16 %v945
      %v1249 = vpack.c.b16 %v1248, %v1247
      %v1252 = vunpack.c.l.b16 %v1153
      %v1253 = vunpack.c.l.b16 %v1154
      %v1254 = vpack.c.b16 %v1253, %v1252
      %v1256 = vsel %vm959, %v1249, 0
      %v1259 = vsel %vm959, %v1254, 0
      %1261 = vmatpush.bf16.xpose.msra.mxu0 0
      %1262 = vmatpush.bf16.xpose.msra.mxu0 0
      %1263 = vmatpush.bf16.xpose.msra.mxu0 0
      %1264 = vmatpush.bf16.xpose.msra.mxu0 0
      %1265 = vmatpush.bf16.xpose.msra.mxu0 0
      %1266 = vmatpush.bf16.xpose.msra.mxu0 0
      %1267 = vmatpush.bf16.xpose.msra.mxu0 0
      %1268 = vmatpush.bf16.xpose.msra.mxu0 %v1259
      %1269 = vmatmul.bf16.gmra.mxu0 %v1256
      %v1270 = vpop.f32.mrf.mxu0
      %v1271 = vadd.f32 0.0, %v1270
      %v1272 = vpop.f32.mrf.mxu0
      %v1273 = vadd.f32 0.0, %v1272
      %1274 = vdwg.mxu0
      %v1275 = vlaneseq
      %v1276 = vshrl.u32 %v1275, 7
      %v1277 = vadd.s32 %v1276, 8
      %vm1278 = vcmp.lt.s32.totalorder %v1276, 0
      %v1279 = vsub.s32 0, %v1276
      %v1280 = vsel %vm1278, %v1279, %v1276
      %v1281 = vshrl.u32 %v1280, 3
      %v1282 = vand.u32 %v1280, 7
      %v1283 = vsub.s32 0, %v1282
      %v1284 = vsel %vm1278, %v1283, %v1282
      %vm1285 = vcmp.lt.s32.totalorder %v1277, 0
      %v1286 = vsub.s32 0, %v1277
      %v1287 = vsel %vm1285, %v1286, %v1277
      %v1288 = vshrl.u32 %v1287, 3
      %v1289 = vand.u32 %v1287, 7
      %v1290 = vsub.s32 0, %v1289
      %v1291 = vsel %vm1285, %v1290, %v1289
      %vm1292 = vcmp.ne.s32.totalorder %v1284, 0
      %vm1293 = vcmp.ne.s32.totalorder %v1291, 0
      %vm1294 = vcmp.lt.s32.totalorder %v1284, 0
      %vm1295 = vcmp.lt.s32.totalorder %v1291, 0
      %vm1296 = vmand %vm1294, %vm1292
      %vm1297 = vmand %vm1295, %vm1293
      %v1298 = vadd.s32 %v1284, 8
      %v1299 = vadd.s32 %v1291, 8
      %v1300 = vsel %vm1296, %v1298, %v1284
      %v1301 = vsel %vm1297, %v1299, %v1291
      %vm1302 = vcmp.eq.s32.totalorder %v1300, 0
      %vm1303 = vcmp.eq.s32.totalorder %v1301, 0
      %v1304 = vsel %vm1302, 1, 0
      %v1305 = vsel %vm1303, 1, 0
      %vm1306 = vcmp.eq.s32.totalorder %v1304, 1
      %vm1307 = vcmp.eq.s32.totalorder %v1305, 1
      %v1308 = vsel %vm1306, %v1181, 0.0
      %v1309 = vsel %vm1307, %v1183, 0.0
      %v1310 = vsel %vm1306, %v1211, 0.0
      %v1311 = vsel %vm1307, %v1213, 0.0
      %v1312 = vsel %vm1306, %v1241, 0.0
      %v1313 = vsel %vm1307, %v1243, 0.0
      %v1314 = vsel %vm1306, %v1271, 0.0
      %v1315 = vsel %vm1307, %v1273, 0.0
      %vm1316 = vcmp.eq.s32.totalorder %v1300, 1
      %vm1317 = vcmp.eq.s32.totalorder %v1301, 1
      %v1318 = vsel %vm1316, 1, 0
      %v1319 = vsel %vm1317, 1, 0
      %vm1320 = vcmp.eq.s32.totalorder %v1318, 1
      %vm1321 = vcmp.eq.s32.totalorder %v1319, 1
      %1330 = vrot.lane.b32.xlu0 %v1308, 127
      %v1331 = vpop.permute.xlu0 %1330
      %1332 = vrot.lane.b32.xlu0 %v1309, 127
      %v1333 = vpop.permute.xlu0 %1332
      %1334 = vrot.lane.b32.xlu0 %v1310, 127
      %v1335 = vpop.permute.xlu0 %1334
      %1336 = vrot.lane.b32.xlu0 %v1311, 127
      %v1337 = vpop.permute.xlu0 %1336
      %1338 = vrot.lane.b32.xlu0 %v1312, 127
      %v1339 = vpop.permute.xlu0 %1338
      %1340 = vrot.lane.b32.xlu0 %v1313, 127
      %v1341 = vpop.permute.xlu0 %1340
      %1342 = vrot.lane.b32.xlu0 %v1314, 127
      %v1343 = vpop.permute.xlu0 %1342
      %1344 = vrot.lane.b32.xlu0 %v1315, 127
      %v1345 = vpop.permute.xlu0 %1344
      %v1354 = vsel %vm1320, %v1181, %v1331
      %v1355 = vsel %vm1321, %v1183, %v1333
      %v1356 = vsel %vm1320, %v1211, %v1335
      %v1357 = vsel %vm1321, %v1213, %v1337
      %v1358 = vsel %vm1320, %v1241, %v1339
      %v1359 = vsel %vm1321, %v1243, %v1341
      %v1360 = vsel %vm1320, %v1271, %v1343
      %v1361 = vsel %vm1321, %v1273, %v1345
      %vm1362 = vcmp.eq.s32.totalorder %v1300, 2
      %vm1363 = vcmp.eq.s32.totalorder %v1301, 2
      %v1364 = vsel %vm1362, 1, 0
      %v1365 = vsel %vm1363, 1, 0
      %vm1366 = vcmp.eq.s32.totalorder %v1364, 1
      %vm1367 = vcmp.eq.s32.totalorder %v1365, 1
      %1376 = vrot.lane.b32.xlu0 %v1354, 127
      %v1377 = vpop.permute.xlu0 %1376
      %1378 = vrot.lane.b32.xlu0 %v1355, 127
      %v1379 = vpop.permute.xlu0 %1378
      %1380 = vrot.lane.b32.xlu0 %v1356, 127
      %v1381 = vpop.permute.xlu0 %1380
      %1382 = vrot.lane.b32.xlu0 %v1357, 127
      %v1383 = vpop.permute.xlu0 %1382
      %1384 = vrot.lane.b32.xlu0 %v1358, 127
      %v1385 = vpop.permute.xlu0 %1384
      %1386 = vrot.lane.b32.xlu0 %v1359, 127
      %v1387 = vpop.permute.xlu0 %1386
      %1388 = vrot.lane.b32.xlu0 %v1360, 127
      %v1389 = vpop.permute.xlu0 %1388
      %1390 = vrot.lane.b32.xlu0 %v1361, 127
      %v1391 = vpop.permute.xlu0 %1390
      %v1400 = vsel %vm1366, %v1181, %v1377
      %v1401 = vsel %vm1367, %v1183, %v1379
      %v1402 = vsel %vm1366, %v1211, %v1381
      %v1403 = vsel %vm1367, %v1213, %v1383
      %v1404 = vsel %vm1366, %v1241, %v1385
      %v1405 = vsel %vm1367, %v1243, %v1387
      %v1406 = vsel %vm1366, %v1271, %v1389
      %v1407 = vsel %vm1367, %v1273, %v1391
      %vm1408 = vcmp.eq.s32.totalorder %v1300, 3
      %vm1409 = vcmp.eq.s32.totalorder %v1301, 3
      %v1410 = vsel %vm1408, 1, 0
      %v1411 = vsel %vm1409, 1, 0
      %vm1412 = vcmp.eq.s32.totalorder %v1410, 1
      %vm1413 = vcmp.eq.s32.totalorder %v1411, 1
      %1422 = vrot.lane.b32.xlu0 %v1400, 127
      %v1423 = vpop.permute.xlu0 %1422
      %1424 = vrot.lane.b32.xlu0 %v1401, 127
      %v1425 = vpop.permute.xlu0 %1424
      %1426 = vrot.lane.b32.xlu0 %v1402, 127
      %v1427 = vpop.permute.xlu0 %1426
      %1428 = vrot.lane.b32.xlu0 %v1403, 127
      %v1429 = vpop.permute.xlu0 %1428
      %1430 = vrot.lane.b32.xlu0 %v1404, 127
      %v1431 = vpop.permute.xlu0 %1430
      %1432 = vrot.lane.b32.xlu0 %v1405, 127
      %v1433 = vpop.permute.xlu0 %1432
      %1434 = vrot.lane.b32.xlu0 %v1406, 127
      %v1435 = vpop.permute.xlu0 %1434
      %1436 = vrot.lane.b32.xlu0 %v1407, 127
      %v1437 = vpop.permute.xlu0 %1436
      %v1446 = vsel %vm1412, %v1181, %v1423
      %v1447 = vsel %vm1413, %v1183, %v1425
      %v1448 = vsel %vm1412, %v1211, %v1427
      %v1449 = vsel %vm1413, %v1213, %v1429
      %v1450 = vsel %vm1412, %v1241, %v1431
      %v1451 = vsel %vm1413, %v1243, %v1433
      %v1452 = vsel %vm1412, %v1271, %v1435
      %v1453 = vsel %vm1413, %v1273, %v1437
      %vm1454 = vcmp.eq.s32.totalorder %v1300, 4
      %vm1455 = vcmp.eq.s32.totalorder %v1301, 4
      %v1456 = vsel %vm1454, 1, 0
      %v1457 = vsel %vm1455, 1, 0
      %vm1458 = vcmp.eq.s32.totalorder %v1456, 1
      %vm1459 = vcmp.eq.s32.totalorder %v1457, 1
      %1468 = vrot.lane.b32.xlu0 %v1446, 127
      %v1469 = vpop.permute.xlu0 %1468
      %1470 = vrot.lane.b32.xlu0 %v1447, 127
      %v1471 = vpop.permute.xlu0 %1470
      %1472 = vrot.lane.b32.xlu0 %v1448, 127
      %v1473 = vpop.permute.xlu0 %1472
      %1474 = vrot.lane.b32.xlu0 %v1449, 127
      %v1475 = vpop.permute.xlu0 %1474
      %1476 = vrot.lane.b32.xlu0 %v1450, 127
      %v1477 = vpop.permute.xlu0 %1476
      %1478 = vrot.lane.b32.xlu0 %v1451, 127
      %v1479 = vpop.permute.xlu0 %1478
      %1480 = vrot.lane.b32.xlu0 %v1452, 127
      %v1481 = vpop.permute.xlu0 %1480
      %1482 = vrot.lane.b32.xlu0 %v1453, 127
      %v1483 = vpop.permute.xlu0 %1482
      %v1492 = vsel %vm1458, %v1181, %v1469
      %v1493 = vsel %vm1459, %v1183, %v1471
      %v1494 = vsel %vm1458, %v1211, %v1473
      %v1495 = vsel %vm1459, %v1213, %v1475
      %v1496 = vsel %vm1458, %v1241, %v1477
      %v1497 = vsel %vm1459, %v1243, %v1479
      %v1498 = vsel %vm1458, %v1271, %v1481
      %v1499 = vsel %vm1459, %v1273, %v1483
      %vm1500 = vcmp.eq.s32.totalorder %v1300, 5
      %vm1501 = vcmp.eq.s32.totalorder %v1301, 5
      %v1502 = vsel %vm1500, 1, 0
      %v1503 = vsel %vm1501, 1, 0
      %vm1504 = vcmp.eq.s32.totalorder %v1502, 1
      %vm1505 = vcmp.eq.s32.totalorder %v1503, 1
      %1514 = vrot.lane.b32.xlu0 %v1492, 127
      %v1515 = vpop.permute.xlu0 %1514
      %1516 = vrot.lane.b32.xlu0 %v1493, 127
      %v1517 = vpop.permute.xlu0 %1516
      %1518 = vrot.lane.b32.xlu0 %v1494, 127
      %v1519 = vpop.permute.xlu0 %1518
      %1520 = vrot.lane.b32.xlu0 %v1495, 127
      %v1521 = vpop.permute.xlu0 %1520
      %1522 = vrot.lane.b32.xlu0 %v1496, 127
      %v1523 = vpop.permute.xlu0 %1522
      %1524 = vrot.lane.b32.xlu0 %v1497, 127
      %v1525 = vpop.permute.xlu0 %1524
      %1526 = vrot.lane.b32.xlu0 %v1498, 127
      %v1527 = vpop.permute.xlu0 %1526
      %1528 = vrot.lane.b32.xlu0 %v1499, 127
      %v1529 = vpop.permute.xlu0 %1528
      %v1538 = vsel %vm1504, %v1181, %v1515
      %v1539 = vsel %vm1505, %v1183, %v1517
      %v1540 = vsel %vm1504, %v1211, %v1519
      %v1541 = vsel %vm1505, %v1213, %v1521
      %v1542 = vsel %vm1504, %v1241, %v1523
      %v1543 = vsel %vm1505, %v1243, %v1525
      %v1544 = vsel %vm1504, %v1271, %v1527
      %v1545 = vsel %vm1505, %v1273, %v1529
      %vm1546 = vcmp.eq.s32.totalorder %v1300, 6
      %vm1547 = vcmp.eq.s32.totalorder %v1301, 6
      %v1548 = vsel %vm1546, 1, 0
      %v1549 = vsel %vm1547, 1, 0
      %vm1550 = vcmp.eq.s32.totalorder %v1548, 1
      %vm1551 = vcmp.eq.s32.totalorder %v1549, 1
      %1560 = vrot.lane.b32.xlu0 %v1538, 127
      %v1561 = vpop.permute.xlu0 %1560
      %1562 = vrot.lane.b32.xlu0 %v1539, 127
      %v1563 = vpop.permute.xlu0 %1562
      %1564 = vrot.lane.b32.xlu0 %v1540, 127
      %v1565 = vpop.permute.xlu0 %1564
      %1566 = vrot.lane.b32.xlu0 %v1541, 127
      %v1567 = vpop.permute.xlu0 %1566
      %1568 = vrot.lane.b32.xlu0 %v1542, 127
      %v1569 = vpop.permute.xlu0 %1568
      %1570 = vrot.lane.b32.xlu0 %v1543, 127
      %v1571 = vpop.permute.xlu0 %1570
      %1572 = vrot.lane.b32.xlu0 %v1544, 127
      %v1573 = vpop.permute.xlu0 %1572
      %1574 = vrot.lane.b32.xlu0 %v1545, 127
      %v1575 = vpop.permute.xlu0 %1574
      %v1584 = vsel %vm1550, %v1181, %v1561
      %v1585 = vsel %vm1551, %v1183, %v1563
      %v1586 = vsel %vm1550, %v1211, %v1565
      %v1587 = vsel %vm1551, %v1213, %v1567
      %v1588 = vsel %vm1550, %v1241, %v1569
      %v1589 = vsel %vm1551, %v1243, %v1571
      %v1590 = vsel %vm1550, %v1271, %v1573
      %v1591 = vsel %vm1551, %v1273, %v1575
      %vm1592 = vcmp.eq.s32.totalorder %v1300, 7
      %vm1593 = vcmp.eq.s32.totalorder %v1301, 7
      %v1594 = vsel %vm1592, 1, 0
      %v1595 = vsel %vm1593, 1, 0
      %vm1596 = vcmp.eq.s32.totalorder %v1594, 1
      %vm1597 = vcmp.eq.s32.totalorder %v1595, 1
      %1606 = vrot.lane.b32.xlu0 %v1584, 127
      %v1607 = vpop.permute.xlu0 %1606
      %1608 = vrot.lane.b32.xlu0 %v1585, 127
      %v1609 = vpop.permute.xlu0 %1608
      %1610 = vrot.lane.b32.xlu0 %v1586, 127
      %v1611 = vpop.permute.xlu0 %1610
      %1612 = vrot.lane.b32.xlu0 %v1587, 127
      %v1613 = vpop.permute.xlu0 %1612
      %1614 = vrot.lane.b32.xlu0 %v1588, 127
      %v1615 = vpop.permute.xlu0 %1614
      %1616 = vrot.lane.b32.xlu0 %v1589, 127
      %v1617 = vpop.permute.xlu0 %1616
      %1618 = vrot.lane.b32.xlu0 %v1590, 127
      %v1619 = vpop.permute.xlu0 %1618
      %1620 = vrot.lane.b32.xlu0 %v1591, 127
      %v1621 = vpop.permute.xlu0 %1620
      %v1630 = vsel %vm1596, %v1181, %v1607
      %v1631 = vsel %vm1597, %v1183, %v1609
      %v1632 = vsel %vm1596, %v1211, %v1611
      %v1633 = vsel %vm1597, %v1213, %v1613
      %v1634 = vsel %vm1596, %v1241, %v1615
      %v1635 = vsel %vm1597, %v1243, %v1617
      %v1636 = vsel %vm1596, %v1271, %v1619
      %v1637 = vsel %vm1597, %v1273, %v1621
      %v1638 = vmul.f32 %v976, 0.35355338
      %v1639 = vmul.f32 %v1000, 0.35355338
      %v1640 = vmul.f32 %v1024, 0.35355338
      %v1641 = vmul.f32 %v1048, 0.35355338
      %v1642 = vmul.f32 %v1072, 0.35355338
      %v1643 = vmul.f32 %v1096, 0.35355338
      %v1644 = vmul.f32 %v1120, 0.35355338
      %v1645 = vmul.f32 %v1144, 0.35355338
      %v1646 = vadd.f32 %v1638, %v1630
      %v1647 = vadd.f32 %v1639, %v1631
      %v1648 = vadd.f32 %v1640, %v1632
      %v1649 = vadd.f32 %v1641, %v1633
      %v1650 = vadd.f32 %v1642, %v1634
      %v1651 = vadd.f32 %v1643, %v1635
      %v1652 = vadd.f32 %v1644, %v1636
      %v1653 = vadd.f32 %v1645, %v1637
      %v1654 = vsel %vm959, %v1646, -inf
      %1655 = vmax.xlane.f32.xlu0 %v1654
      %v1656 = vpop.xlane.xlu0 %1655
      %v1657 = vsel %vm959, %v1647, -inf
      %1658 = vmax.xlane.f32.xlu0 %v1657
      %v1659 = vpop.xlane.xlu0 %1658
      %v1660 = vsel %vm959, %v1648, -inf
      %1661 = vmax.xlane.f32.xlu0 %v1660
      %v1662 = vpop.xlane.xlu0 %1661
      %v1663 = vsel %vm959, %v1649, -inf
      %1664 = vmax.xlane.f32.xlu0 %v1663
      %v1665 = vpop.xlane.xlu0 %1664
      %v1666 = vsel %vm959, %v1650, -inf
      %1667 = vmax.xlane.f32.xlu0 %v1666
      %v1668 = vpop.xlane.xlu0 %1667
      %v1669 = vsel %vm959, %v1651, -inf
      %1670 = vmax.xlane.f32.xlu0 %v1669
      %v1671 = vpop.xlane.xlu0 %1670
      %v1672 = vsel %vm959, %v1652, -inf
      %1673 = vmax.xlane.f32.xlu0 %v1672
      %v1674 = vpop.xlane.xlu0 %1673
      %v1675 = vsel %vm959, %v1653, -inf
      %1676 = vmax.xlane.f32.xlu0 %v1675
      %v1677 = vpop.xlane.xlu0 %1676
      %v1678 = vsub.f32 %v1646, %v1656
      %v1679 = vsub.f32 %v1647, %v1659
      %v1680 = vsub.f32 %v1648, %v1662
      %v1681 = vsub.f32 %v1649, %v1665
      %v1682 = vsub.f32 %v1650, %v1668
      %v1683 = vsub.f32 %v1651, %v1671
      %v1684 = vsub.f32 %v1652, %v1674
      %v1685 = vsub.f32 %v1653, %v1677
      %v1686 = vmul.f32 %v1678, 1.442695
      %v1687 = vpow.pop %v1686
      %v1688 = vmul.f32 %v1679, 1.442695
      %v1689 = vpow.pop %v1688
      %v1690 = vmul.f32 %v1680, 1.442695
      %v1691 = vpow.pop %v1690
      %v1692 = vmul.f32 %v1681, 1.442695
      %v1693 = vpow.pop %v1692
      %v1694 = vmul.f32 %v1682, 1.442695
      %v1695 = vpow.pop %v1694
      %v1696 = vmul.f32 %v1683, 1.442695
      %v1697 = vpow.pop %v1696
      %v1698 = vmul.f32 %v1684, 1.442695
      %v1699 = vpow.pop %v1698
      %v1700 = vmul.f32 %v1685, 1.442695
      %v1701 = vpow.pop %v1700
      %v1702 = vsel %vm959, %v1687, 0.0
      %1703 = vadd.xlane.f32.xlu0 %v1702
      %v1704 = vpop.xlane.xlu0 %1703
      %v1705 = vsel %vm959, %v1689, 0.0
      %1706 = vadd.xlane.f32.xlu0 %v1705
      %v1707 = vpop.xlane.xlu0 %1706
      %v1708 = vsel %vm959, %v1691, 0.0
      %1709 = vadd.xlane.f32.xlu0 %v1708
      %v1710 = vpop.xlane.xlu0 %1709
      %v1711 = vsel %vm959, %v1693, 0.0
      %1712 = vadd.xlane.f32.xlu0 %v1711
      %v1713 = vpop.xlane.xlu0 %1712
      %v1714 = vsel %vm959, %v1695, 0.0
      %1715 = vadd.xlane.f32.xlu0 %v1714
      %v1716 = vpop.xlane.xlu0 %1715
      %v1717 = vsel %vm959, %v1697, 0.0
      %1718 = vadd.xlane.f32.xlu0 %v1717
      %v1719 = vpop.xlane.xlu0 %1718
      %v1720 = vsel %vm959, %v1699, 0.0
      %1721 = vadd.xlane.f32.xlu0 %v1720
      %v1722 = vpop.xlane.xlu0 %1721
      %v1723 = vsel %vm959, %v1701, 0.0
      %1724 = vadd.xlane.f32.xlu0 %v1723
      %v1725 = vpop.xlane.xlu0 %1724
      %v1726 = vrcp.pop %v1704
      %v1727 = vmul.f32 %v1704, %v1726
      %v1728 = vsub.f32 1.0, %v1727
      %v1729 = vmul.f32 %v1726, %v1728
      %v1730 = vadd.f32 %v1726, %v1729
      %vm1731 = vweird.f32 %v1704
      %vm1732 = vweird.f32 %v1726
      %vm1733 = vmor %vm1731, %vm1732
      %v1734 = vsel %vm1733, %v1726, %v1730
      %v1735 = vand.u32 2147483647, %v1704
      %vm1736 = vcmp.eq.f32.partialorder %v1735, 8.507059e+37
      %v1737 = vand.u32 %v1704, 2147483648
      %v1738 = vor.u32 1.1754944e-38, %v1737
      %v1739 = vsel %vm1736, %v1738, %v1734
      %v1740 = vmul.f32 %v1687, %v1739
      %v1741 = vrcp.pop %v1707
      %v1742 = vmul.f32 %v1707, %v1741
      %v1743 = vsub.f32 1.0, %v1742
      %v1744 = vmul.f32 %v1741, %v1743
      %v1745 = vadd.f32 %v1741, %v1744
      %vm1746 = vweird.f32 %v1707
      %vm1747 = vweird.f32 %v1741
      %vm1748 = vmor %vm1746, %vm1747
      %v1749 = vsel %vm1748, %v1741, %v1745
      %v1750 = vand.u32 2147483647, %v1707
      %vm1751 = vcmp.eq.f32.partialorder %v1750, 8.507059e+37
      %v1752 = vand.u32 %v1707, 2147483648
      %v1753 = vor.u32 1.1754944e-38, %v1752
      %v1754 = vsel %vm1751, %v1753, %v1749
      %v1755 = vmul.f32 %v1689, %v1754
      %v1756 = vrcp.pop %v1710
      %v1757 = vmul.f32 %v1710, %v1756
      %v1758 = vsub.f32 1.0, %v1757
      %v1759 = vmul.f32 %v1756, %v1758
      %v1760 = vadd.f32 %v1756, %v1759
      %vm1761 = vweird.f32 %v1710
      %vm1762 = vweird.f32 %v1756
      %vm1763 = vmor %vm1761, %vm1762
      %v1764 = vsel %vm1763, %v1756, %v1760
      %v1765 = vand.u32 2147483647, %v1710
      %vm1766 = vcmp.eq.f32.partialorder %v1765, 8.507059e+37
      %v1767 = vand.u32 %v1710, 2147483648
      %v1768 = vor.u32 1.1754944e-38, %v1767
      %v1769 = vsel %vm1766, %v1768, %v1764
      %v1770 = vmul.f32 %v1691, %v1769
      %v1771 = vrcp.pop %v1713
      %v1772 = vmul.f32 %v1713, %v1771
      %v1773 = vsub.f32 1.0, %v1772
      %v1774 = vmul.f32 %v1771, %v1773
      %v1775 = vadd.f32 %v1771, %v1774
      %vm1776 = vweird.f32 %v1713
      %vm1777 = vweird.f32 %v1771
      %vm1778 = vmor %vm1776, %vm1777
      %v1779 = vsel %vm1778, %v1771, %v1775
      %v1780 = vand.u32 2147483647, %v1713
      %vm1781 = vcmp.eq.f32.partialorder %v1780, 8.507059e+37
      %v1782 = vand.u32 %v1713, 2147483648
      %v1783 = vor.u32 1.1754944e-38, %v1782
      %v1784 = vsel %vm1781, %v1783, %v1779
      %v1785 = vmul.f32 %v1693, %v1784
      %v1786 = vrcp.pop %v1716
      %v1787 = vmul.f32 %v1716, %v1786
      %v1788 = vsub.f32 1.0, %v1787
      %v1789 = vmul.f32 %v1786, %v1788
      %v1790 = vadd.f32 %v1786, %v1789
      %vm1791 = vweird.f32 %v1716
      %vm1792 = vweird.f32 %v1786
      %vm1793 = vmor %vm1791, %vm1792
      %v1794 = vsel %vm1793, %v1786, %v1790
      %v1795 = vand.u32 2147483647, %v1716
      %vm1796 = vcmp.eq.f32.partialorder %v1795, 8.507059e+37
      %v1797 = vand.u32 %v1716, 2147483648
      %v1798 = vor.u32 1.1754944e-38, %v1797
      %v1799 = vsel %vm1796, %v1798, %v1794
      %v1800 = vmul.f32 %v1695, %v1799
      %v1801 = vrcp.pop %v1719
      %v1802 = vmul.f32 %v1719, %v1801
      %v1803 = vsub.f32 1.0, %v1802
      %v1804 = vmul.f32 %v1801, %v1803
      %v1805 = vadd.f32 %v1801, %v1804
      %vm1806 = vweird.f32 %v1719
      %vm1807 = vweird.f32 %v1801
      %vm1808 = vmor %vm1806, %vm1807
      %v1809 = vsel %vm1808, %v1801, %v1805
      %v1810 = vand.u32 2147483647, %v1719
      %vm1811 = vcmp.eq.f32.partialorder %v1810, 8.507059e+37
      %v1812 = vand.u32 %v1719, 2147483648
      %v1813 = vor.u32 1.1754944e-38, %v1812
      %v1814 = vsel %vm1811, %v1813, %v1809
      %v1815 = vmul.f32 %v1697, %v1814
      %v1816 = vrcp.pop %v1722
      %v1817 = vmul.f32 %v1722, %v1816
      %v1818 = vsub.f32 1.0, %v1817
      %v1819 = vmul.f32 %v1816, %v1818
      %v1820 = vadd.f32 %v1816, %v1819
      %vm1821 = vweird.f32 %v1722
      %vm1822 = vweird.f32 %v1816
      %vm1823 = vmor %vm1821, %vm1822
      %v1824 = vsel %vm1823, %v1816, %v1820
      %v1825 = vand.u32 2147483647, %v1722
      %vm1826 = vcmp.eq.f32.partialorder %v1825, 8.507059e+37
      %v1827 = vand.u32 %v1722, 2147483648
      %v1828 = vor.u32 1.1754944e-38, %v1827
      %v1829 = vsel %vm1826, %v1828, %v1824
      %v1830 = vmul.f32 %v1699, %v1829
      %v1831 = vrcp.pop %v1725
      %v1832 = vmul.f32 %v1725, %v1831
      %v1833 = vsub.f32 1.0, %v1832
      %v1834 = vmul.f32 %v1831, %v1833
      %v1835 = vadd.f32 %v1831, %v1834
      %vm1836 = vweird.f32 %v1725
      %vm1837 = vweird.f32 %v1831
      %vm1838 = vmor %vm1836, %vm1837
      %v1839 = vsel %vm1838, %v1831, %v1835
      %v1840 = vand.u32 2147483647, %v1725
      %vm1841 = vcmp.eq.f32.partialorder %v1840, 8.507059e+37
      %v1842 = vand.u32 %v1725, 2147483648
      %v1843 = vor.u32 1.1754944e-38, %v1842
      %v1844 = vsel %vm1841, %v1843, %v1839
      %v1845 = vmul.f32 %v1701, %v1844
      %v1846 = vpack.c.bf16 %v1740, %v1740
      %v1847 = vpack.c.bf16 %v1755, %v1755
      %v1848 = vpack.c.bf16 %v1770, %v1770
      %v1849 = vpack.c.bf16 %v1785, %v1785
      %v1850 = vpack.c.bf16 %v1800, %v1800
      %v1851 = vpack.c.bf16 %v1815, %v1815
      %v1852 = vpack.c.bf16 %v1830, %v1830
      %v1853 = vpack.c.bf16 %v1845, %v1845
      %1854 = vrot.lane.b32.xlu0 %v956, 112
      %v1855 = vpop.permute.xlu0 %1854
      %v1857 = vsel %vm959, %v1846, 0
      %vm1859 = vcmask 1043456
      %v1861 = vsel %vm1859, %v1855, 0
      %1863 = vmatpush.bf16.msra.mxu0 0
      %1864 = vmatpush.bf16.msra.mxu0 0
      %1865 = vmatpush.bf16.msra.mxu0 0
      %1866 = vmatpush.bf16.msra.mxu0 0
      %1867 = vmatpush.bf16.msra.mxu0 0
      %1868 = vmatpush.bf16.msra.mxu0 0
      %1869 = vmatpush.bf16.msra.mxu0 0
      %1870 = vmatpush.bf16.msra.mxu0 %v1861
      %1871 = vmatmul.bf16.gmra.mxu0 %v1857
      %v1872 = vpop.f32.mrf.mxu0
      %v1873 = vadd.f32 0.0, %v1872
      %v1874 = vpop.f32.mrf.mxu0
      %1875 = vdwg.mxu0
      %1876 = vrot.lane.b32.xlu0 %v981, 112
      %v1877 = vpop.permute.xlu0 %1876
      %v1879 = vsel %vm959, %v1847, 0
      %v1882 = vsel %vm1859, %v1877, 0
      %1884 = vmatpush.bf16.msra.mxu0 0
      %1885 = vmatpush.bf16.msra.mxu0 0
      %1886 = vmatpush.bf16.msra.mxu0 0
      %1887 = vmatpush.bf16.msra.mxu0 0
      %1888 = vmatpush.bf16.msra.mxu0 0
      %1889 = vmatpush.bf16.msra.mxu0 0
      %1890 = vmatpush.bf16.msra.mxu0 0
      %1891 = vmatpush.bf16.msra.mxu0 %v1882
      %1892 = vmatmul.bf16.gmra.mxu0 %v1879
      %v1893 = vpop.f32.mrf.mxu0
      %v1894 = vadd.f32 0.0, %v1893
      %v1895 = vpop.f32.mrf.mxu0
      %1896 = vdwg.mxu0
      %1897 = vrot.lane.b32.xlu0 %v1005, 112
      %v1898 = vpop.permute.xlu0 %1897
      %v1900 = vsel %vm959, %v1848, 0
      %v1903 = vsel %vm1859, %v1898, 0
      %1905 = vmatpush.bf16.msra.mxu0 0
      %1906 = vmatpush.bf16.msra.mxu0 0
      %1907 = vmatpush.bf16.msra.mxu0 0
      %1908 = vmatpush.bf16.msra.mxu0 0
      %1909 = vmatpush.bf16.msra.mxu0 0
      %1910 = vmatpush.bf16.msra.mxu0 0
      %1911 = vmatpush.bf16.msra.mxu0 0
      %1912 = vmatpush.bf16.msra.mxu0 %v1903
      %1913 = vmatmul.bf16.gmra.mxu0 %v1900
      %v1914 = vpop.f32.mrf.mxu0
      %v1915 = vadd.f32 0.0, %v1914
      %v1916 = vpop.f32.mrf.mxu0
      %1917 = vdwg.mxu0
      %1918 = vrot.lane.b32.xlu0 %v1029, 112
      %v1919 = vpop.permute.xlu0 %1918
      %v1921 = vsel %vm959, %v1849, 0
      %v1924 = vsel %vm1859, %v1919, 0
      %1926 = vmatpush.bf16.msra.mxu0 0
      %1927 = vmatpush.bf16.msra.mxu0 0
      %1928 = vmatpush.bf16.msra.mxu0 0
      %1929 = vmatpush.bf16.msra.mxu0 0
      %1930 = vmatpush.bf16.msra.mxu0 0
      %1931 = vmatpush.bf16.msra.mxu0 0
      %1932 = vmatpush.bf16.msra.mxu0 0
      %1933 = vmatpush.bf16.msra.mxu0 %v1924
      %1934 = vmatmul.bf16.gmra.mxu0 %v1921
      %v1935 = vpop.f32.mrf.mxu0
      %v1936 = vadd.f32 0.0, %v1935
      %v1937 = vpop.f32.mrf.mxu0
      %1938 = vdwg.mxu0
      %1939 = vrot.lane.b32.xlu0 %v1053, 112
      %v1940 = vpop.permute.xlu0 %1939
      %v1942 = vsel %vm959, %v1850, 0
      %v1945 = vsel %vm1859, %v1940, 0
      %1947 = vmatpush.bf16.msra.mxu0 0
      %1948 = vmatpush.bf16.msra.mxu0 0
      %1949 = vmatpush.bf16.msra.mxu0 0
      %1950 = vmatpush.bf16.msra.mxu0 0
      %1951 = vmatpush.bf16.msra.mxu0 0
      %1952 = vmatpush.bf16.msra.mxu0 0
      %1953 = vmatpush.bf16.msra.mxu0 0
      %1954 = vmatpush.bf16.msra.mxu0 %v1945
      %1955 = vmatmul.bf16.gmra.mxu0 %v1942
      %v1956 = vpop.f32.mrf.mxu0
      %v1957 = vadd.f32 0.0, %v1956
      %v1958 = vpop.f32.mrf.mxu0
      %1959 = vdwg.mxu0
      %1960 = vrot.lane.b32.xlu0 %v1077, 112
      %v1961 = vpop.permute.xlu0 %1960
      %v1963 = vsel %vm959, %v1851, 0
      %v1966 = vsel %vm1859, %v1961, 0
      %1968 = vmatpush.bf16.msra.mxu0 0
      %1969 = vmatpush.bf16.msra.mxu0 0
      %1970 = vmatpush.bf16.msra.mxu0 0
      %1971 = vmatpush.bf16.msra.mxu0 0
      %1972 = vmatpush.bf16.msra.mxu0 0
      %1973 = vmatpush.bf16.msra.mxu0 0
      %1974 = vmatpush.bf16.msra.mxu0 0
      %1975 = vmatpush.bf16.msra.mxu0 %v1966
      %1976 = vmatmul.bf16.gmra.mxu0 %v1963
      %v1977 = vpop.f32.mrf.mxu0
      %v1978 = vadd.f32 0.0, %v1977
      %v1979 = vpop.f32.mrf.mxu0
      %1980 = vdwg.mxu0
      %1981 = vrot.lane.b32.xlu0 %v1101, 112
      %v1982 = vpop.permute.xlu0 %1981
      %v1984 = vsel %vm959, %v1852, 0
      %v1987 = vsel %vm1859, %v1982, 0
      %1989 = vmatpush.bf16.msra.mxu0 0
      %1990 = vmatpush.bf16.msra.mxu0 0
      %1991 = vmatpush.bf16.msra.mxu0 0
      %1992 = vmatpush.bf16.msra.mxu0 0
      %1993 = vmatpush.bf16.msra.mxu0 0
      %1994 = vmatpush.bf16.msra.mxu0 0
      %1995 = vmatpush.bf16.msra.mxu0 0
      %1996 = vmatpush.bf16.msra.mxu0 %v1987
      %1997 = vmatmul.bf16.gmra.mxu0 %v1984
      %v1998 = vpop.f32.mrf.mxu0
      %v1999 = vadd.f32 0.0, %v1998
      %v2000 = vpop.f32.mrf.mxu0
      %2001 = vdwg.mxu0
      %2002 = vrot.lane.b32.xlu0 %v1125, 112
      %v2003 = vpop.permute.xlu0 %2002
      %v2005 = vsel %vm959, %v1853, 0
      %v2008 = vsel %vm1859, %v2003, 0
      %2010 = vmatpush.bf16.msra.mxu0 0
      %2011 = vmatpush.bf16.msra.mxu0 0
      %2012 = vmatpush.bf16.msra.mxu0 0
      %2013 = vmatpush.bf16.msra.mxu0 0
      %2014 = vmatpush.bf16.msra.mxu0 0
      %2015 = vmatpush.bf16.msra.mxu0 0
      %2016 = vmatpush.bf16.msra.mxu0 0
      %2017 = vmatpush.bf16.msra.mxu0 %v2008
      %2018 = vmatmul.bf16.gmra.mxu0 %v2005
      %v2019 = vpop.f32.mrf.mxu0
      %v2020 = vadd.f32 0.0, %v2019
      %v2021 = vpop.f32.mrf.mxu0
      %2022 = vdwg.mxu0
      %v2023 = vpack.c.bf16 %v1873, %v1873
      %v2024 = vpack.c.bf16 %v1894, %v1894
      %v2025 = vpack.c.bf16 %v1915, %v1915
      %v2026 = vpack.c.bf16 %v1936, %v1936
      %v2027 = vpack.c.bf16 %v1957, %v1957
      %v2028 = vpack.c.bf16 %v1978, %v1978
      %v2029 = vpack.c.bf16 %v1999, %v1999
      %v2030 = vpack.c.bf16 %v2020, %v2020
      %v2031 = vld [vmem:[%s689] sm:$0xf]
      %v2032 = vld [vmem:[%s689 + $0x4] sm:$0xf]
      %v2033 = vld [vmem:[%s689 + $0x8] sm:$0xf]
      %v2034 = vld [vmem:[%s689 + $0xc] sm:$0xf]
      %v2037 = vunpack.c.l.b16 %v2023
      %v2038 = vunpack.c.l.b16 %v2024
      %v2039 = vpack.c.b16 %v2038, %v2037
      %v2041 = vsel %vm959, %v2039, 0
      %v2044 = vsel %vm1859, %v2031, 0
      %2046 = vmatpush.bf16.msra.mxu0 0
      %2047 = vmatpush.bf16.msra.mxu0 0
      %2048 = vmatpush.bf16.msra.mxu0 0
      %2049 = vmatpush.bf16.msra.mxu0 0
      %2050 = vmatpush.bf16.msra.mxu0 0
      %2051 = vmatpush.bf16.msra.mxu0 0
      %2052 = vmatpush.bf16.msra.mxu0 0
      %2053 = vmatpush.bf16.msra.mxu0 %v2044
      %2054 = vmatmul.bf16.gmra.mxu0 %v2041
      %v2055 = vpop.f32.mrf.mxu0
      %v2056 = vadd.f32 0.0, %v2055
      %v2057 = vpop.f32.mrf.mxu0
      %v2058 = vadd.f32 0.0, %v2057
      %2059 = vdwg.mxu0
      %v2062 = vunpack.c.l.b16 %v2025
      %v2063 = vunpack.c.l.b16 %v2026
      %v2064 = vpack.c.b16 %v2063, %v2062
      %v2066 = vsel %vm959, %v2064, 0
      %v2069 = vsel %vm1859, %v2032, 0
      %2071 = vmatpush.bf16.msra.mxu0 0
      %2072 = vmatpush.bf16.msra.mxu0 0
      %2073 = vmatpush.bf16.msra.mxu0 0
      %2074 = vmatpush.bf16.msra.mxu0 0
      %2075 = vmatpush.bf16.msra.mxu0 0
      %2076 = vmatpush.bf16.msra.mxu0 0
      %2077 = vmatpush.bf16.msra.mxu0 0
      %2078 = vmatpush.bf16.msra.mxu0 %v2069
      %2079 = vmatmul.bf16.gmra.mxu0 %v2066
      %v2080 = vpop.f32.mrf.mxu0
      %v2081 = vadd.f32 0.0, %v2080
      %v2082 = vpop.f32.mrf.mxu0
      %v2083 = vadd.f32 0.0, %v2082
      %2084 = vdwg.mxu0
      %v2087 = vunpack.c.l.b16 %v2027
      %v2088 = vunpack.c.l.b16 %v2028
      %v2089 = vpack.c.b16 %v2088, %v2087
      %v2091 = vsel %vm959, %v2089, 0
      %v2094 = vsel %vm1859, %v2033, 0
      %2096 = vmatpush.bf16.msra.mxu0 0
      %2097 = vmatpush.bf16.msra.mxu0 0
      %2098 = vmatpush.bf16.msra.mxu0 0
      %2099 = vmatpush.bf16.msra.mxu0 0
      %2100 = vmatpush.bf16.msra.mxu0 0
      %2101 = vmatpush.bf16.msra.mxu0 0
      %2102 = vmatpush.bf16.msra.mxu0 0
      %2103 = vmatpush.bf16.msra.mxu0 %v2094
      %2104 = vmatmul.bf16.gmra.mxu0 %v2091
      %v2105 = vpop.f32.mrf.mxu0
      %v2106 = vadd.f32 0.0, %v2105
      %v2107 = vpop.f32.mrf.mxu0
      %v2108 = vadd.f32 0.0, %v2107
      %2109 = vdwg.mxu0
      %v2112 = vunpack.c.l.b16 %v2029
      %v2113 = vunpack.c.l.b16 %v2030
      %v2114 = vpack.c.b16 %v2113, %v2112
      %v2116 = vsel %vm959, %v2114, 0
      %v2119 = vsel %vm1859, %v2034, 0
      %2121 = vmatpush.bf16.msra.mxu0 0
      %2122 = vmatpush.bf16.msra.mxu0 0
      %2123 = vmatpush.bf16.msra.mxu0 0
      %2124 = vmatpush.bf16.msra.mxu0 0
      %2125 = vmatpush.bf16.msra.mxu0 0
      %2126 = vmatpush.bf16.msra.mxu0 0
      %2127 = vmatpush.bf16.msra.mxu0 0
      %2128 = vmatpush.bf16.msra.mxu0 %v2119
      %2129 = vmatmul.bf16.gmra.mxu0 %v2116
      %v2130 = vpop.f32.mrf.mxu0
      %v2131 = vadd.f32 0.0, %v2130
      %v2132 = vpop.f32.mrf.mxu0
      %v2133 = vadd.f32 0.0, %v2132
      %2134 = vdwg.mxu0
      %v2135 = vsel %vm786, %v2056, 0.0
      %v2136 = vsel %vm786, %v2081, 0.0
      %v2137 = vadd.f32 %v2135, %v2136
      %v2138 = vsel %vm786, %v2106, 0.0
      %v2139 = vadd.f32 %v2137, %v2138
      %v2140 = vsel %vm786, %v2131, 0.0
      %v2141 = vadd.f32 %v2139, %v2140
      %v2142 = vsel %vm786, %v2058, 0.0
      %v2143 = vsel %vm786, %v2083, 0.0
      %v2144 = vadd.f32 %v2142, %v2143
      %v2145 = vsel %vm786, %v2108, 0.0
      %v2146 = vadd.f32 %v2144, %v2145
      %v2147 = vsel %vm786, %v2133, 0.0
      %v2148 = vadd.f32 %v2146, %v2147
      %v2149 = vld [vmem:[%s692] sm:$0x1]
      %v2151 = vperm.slane %v2149, 0
      %v2153 = vadd.f32 %v2141, %v2151
      %v2154 = vadd.f32 %v2148, %v2151
      %v2155 = vld [vmem:[%s695] sm:$0x1]
      %v2156 = vld [vmem:[%s698] sm:$0x1]
      %v2157 = vsel %vm786, %v2153, 0.0
      %2158 = vadd.xlane.f32.xlu0 %v2157
      %v2159 = vpop.xlane.xlu0 %2158
      %v2160 = vsel %vm786, %v2154, 0.0
      %2161 = vadd.xlane.f32.xlu0 %v2160
      %v2162 = vpop.xlane.xlu0 %2161
      %v2163 = vrcp.pop 32.0
      %v2164 = vmul.f32 32.0, %v2163
      %v2165 = vsub.f32 1.0, %v2164
      %v2166 = vmul.f32 %v2163, %v2165
      %v2167 = vadd.f32 %v2163, %v2166
      %vm2168 = vweird.f32 %v2163
      %v2169 = vsel %vm2168, %v2163, %v2167
      %v2170 = vmul.f32 %v2159, %v2169
      %v2171 = vmul.f32 %v2162, %v2169
      %v2172 = vsub.f32 %v2153, %v2170
      %v2173 = vsub.f32 %v2154, %v2171
      %v2174 = vmul.f32 %v2172, %v2172
      %v2175 = vmul.f32 %v2173, %v2173
      %v2176 = vsel %vm786, %v2174, 0.0
      %2177 = vadd.xlane.f32.xlu0 %v2176
      %v2178 = vpop.xlane.xlu0 %2177
      %v2179 = vsel %vm786, %v2175, 0.0
      %2180 = vadd.xlane.f32.xlu0 %v2179
      %v2181 = vpop.xlane.xlu0 %2180
      %v2182 = vmul.f32 %v2178, %v2169
      %v2183 = vmul.f32 %v2181, %v2169
      %v2184 = vadd.f32 %v2182, 1e-05
      %v2185 = vadd.f32 %v2183, 1e-05
      %v2186 = vrsqrt.pop %v2184
      %v2187 = vmul.f32 %v2186, %v2184
      %v2188 = vmul.f32 %v2187, %v2186
      %v2189 = vmul.f32 0.5, %v2188
      %v2190 = vsub.f32 1.5, %v2189
      %v2191 = vmul.f32 %v2186, %v2190
      %vm2192 = vweird.f32 %v2184
      %vm2193 = vweird.f32 %v2186
      %vm2194 = vmor %vm2192, %vm2193
      %v2195 = vsel %vm2194, %v2186, %v2191
      %v2196 = vrsqrt.pop %v2185
      %v2197 = vmul.f32 %v2196, %v2185
      %v2198 = vmul.f32 %v2197, %v2196
      %v2199 = vmul.f32 0.5, %v2198
      %v2200 = vsub.f32 1.5, %v2199
      %v2201 = vmul.f32 %v2196, %v2200
      %vm2202 = vweird.f32 %v2185
      %vm2203 = vweird.f32 %v2196
      %vm2204 = vmor %vm2202, %vm2203
      %v2205 = vsel %vm2204, %v2196, %v2201
      %v2206 = vmul.f32 %v2172, %v2195
      %v2207 = vmul.f32 %v2173, %v2205
      %v2209 = vperm.slane %v2155, 0
      %v2211 = vmul.f32 %v2206, %v2209
      %v2212 = vmul.f32 %v2207, %v2209
      %v2214 = vperm.slane %v2156, 0
      %v2216 = vadd.f32 %v2211, %v2214
      %v2217 = vadd.f32 %v2212, %v2214
      %v2218 = vadd.f32 %v2216, %v749
      %v2219 = vadd.f32 %v2217, %v750
      %v2220 = vpack.c.bf16 %v2219, %v2218
      %v2221 = vld [vmem:[%s703] sm:$0xf]
      %v2222 = vld [vmem:[%s703 + $0x4] sm:$0xf]
      %v2223 = vld [vmem:[%s703 + $0x8] sm:$0xf]
      %v2224 = vld [vmem:[%s703 + $0xc] sm:$0xf]
      %v2225 = vld [vmem:[%s706] sm:$0x1]
      %v2227 = vperm.slane %v2225, 0
      %v2233 = vunpack.c.l.b16 %v2221
      %v2234 = vunpack.c.l.b16 %v2222
      %v2235 = vunpack.c.l.b16 %v2223
      %v2236 = vunpack.c.l.b16 %v2224
      %v2237 = vpack.c.b16 %v2234, %v2233
      %v2238 = vpack.c.b16 %v2236, %v2235
      %v2242 = vsel %vm786, %v2220, 0
      %2244 = vmatpush.bf16.msra.mxu0 0
      %2245 = vmatpush.bf16.msra.mxu0 0
      %2246 = vmatpush.bf16.msra.mxu0 0
      %2247 = vmatpush.bf16.msra.mxu0 0
      %2248 = vmatpush.bf16.msra.mxu0 0
      %2249 = vmatpush.bf16.msra.mxu0 0
      %2250 = vmatpush.bf16.msra.mxu0 %v2238
      %2251 = vmatpush.bf16.msra.mxu0 %v2237
      %2252 = vmatmul.bf16.gmra.mxu0 %v2242
      %v2253 = vpop.f32.mrf.mxu0
      %v2254 = vadd.f32 %v2227, %v2253
      %v2255 = vpop.f32.mrf.mxu0
      %v2256 = vadd.f32 %v2227, %v2255
      %2257 = vdwg.mxu0
      %v2258 = vmul.f32 %v2254, 0.5
      %v2259 = vmul.f32 %v2256, 0.5
      %v2260 = vmul.f32 %v2254, 0.044715
      %v2261 = vmul.f32 %v2256, 0.044715
      %v2262 = vmul.f32 %v2260, %v2254
      %v2263 = vmul.f32 %v2261, %v2256
      %v2264 = vmul.f32 %v2262, %v2254
      %v2265 = vmul.f32 %v2263, %v2256
      %v2266 = vadd.f32 %v2254, %v2264
      %v2267 = vadd.f32 %v2256, %v2265
      %v2268 = vmul.f32 %v2266, 0.7978846
      %v2269 = vmul.f32 %v2267, 0.7978846
      %v2270 = vtanh.pop %v2268
      %v2271 = vtanh.pop %v2269
      %v2272 = vadd.f32 %v2270, 1.0
      %v2273 = vadd.f32 %v2271, 1.0
      %v2274 = vmul.f32 %v2258, %v2272
      %v2275 = vmul.f32 %v2259, %v2273
      %v2276 = vpack.c.bf16 %v2275, %v2274
      %v2277 = vld [vmem:[%s711] sm:$0xf]
      %v2278 = vld [vmem:[%s711 + $0x4] sm:$0xf]
      %v2279 = vld [vmem:[%s711 + $0x8] sm:$0xf]
      %v2280 = vld [vmem:[%s711 + $0xc] sm:$0xf]
      %v2281 = vld [vmem:[%s711 + $0x10] sm:$0xf]
      %v2282 = vld [vmem:[%s711 + $0x14] sm:$0xf]
      %v2283 = vld [vmem:[%s711 + $0x18] sm:$0xf]
      %v2284 = vld [vmem:[%s711 + $0x1c] sm:$0xf]
      %v2285 = vld [vmem:[%s711 + $0x20] sm:$0xf]
      %v2286 = vld [vmem:[%s711 + $0x24] sm:$0xf]
      %v2287 = vld [vmem:[%s711 + $0x28] sm:$0xf]
      %v2288 = vld [vmem:[%s711 + $0x2c] sm:$0xf]
      %v2289 = vld [vmem:[%s711 + $0x30] sm:$0xf]
      %v2290 = vld [vmem:[%s711 + $0x34] sm:$0xf]
      %v2291 = vld [vmem:[%s711 + $0x38] sm:$0xf]
      %v2292 = vld [vmem:[%s711 + $0x3c] sm:$0xf]
      %v2293 = vld [vmem:[%s714] sm:$0x1]
      %v2295 = vperm.slane %v2293, 0
      %v2313 = vunpack.c.l.b16 %v2277
      %v2314 = vunpack.c.l.b16 %v2278
      %v2315 = vunpack.c.l.b16 %v2279
      %v2316 = vunpack.c.l.b16 %v2280
      %v2317 = vunpack.c.l.b16 %v2281
      %v2318 = vunpack.c.l.b16 %v2282
      %v2319 = vunpack.c.l.b16 %v2283
      %v2320 = vunpack.c.l.b16 %v2284
      %v2321 = vunpack.c.l.b16 %v2285
      %v2322 = vunpack.c.l.b16 %v2286
      %v2323 = vunpack.c.l.b16 %v2287
      %v2324 = vunpack.c.l.b16 %v2288
      %v2325 = vunpack.c.l.b16 %v2289
      %v2326 = vunpack.c.l.b16 %v2290
      %v2327 = vunpack.c.l.b16 %v2291
      %v2328 = vunpack.c.l.b16 %v2292
      %v2329 = vpack.c.b16 %v2314, %v2313
      %v2330 = vpack.c.b16 %v2316, %v2315
      %v2331 = vpack.c.b16 %v2318, %v2317
      %v2332 = vpack.c.b16 %v2320, %v2319
      %v2333 = vpack.c.b16 %v2322, %v2321
      %v2334 = vpack.c.b16 %v2324, %v2323
      %v2335 = vpack.c.b16 %v2326, %v2325
      %v2336 = vpack.c.b16 %v2328, %v2327
      %2345 = vmatpush.bf16.msra.mxu0 %v2336
      %2346 = vmatpush.bf16.msra.mxu0 %v2335
      %2347 = vmatpush.bf16.msra.mxu0 %v2334
      %2348 = vmatpush.bf16.msra.mxu0 %v2333
      %2349 = vmatpush.bf16.msra.mxu0 %v2332
      %2350 = vmatpush.bf16.msra.mxu0 %v2331
      %2351 = vmatpush.bf16.msra.mxu0 %v2330
      %2352 = vmatpush.bf16.msra.mxu0 %v2329
      %2353 = vmatmul.bf16.gmra.mxu0 %v2276
      %v2354 = vpop.f32.mrf.mxu0
      %v2355 = vadd.f32 %v2295, %v2354
      %v2356 = vpop.f32.mrf.mxu0
      %v2357 = vadd.f32 %v2295, %v2356
      %2358 = vdwg.mxu0
      %v2359 = vld [vmem:[%s717] sm:$0x1]
      %v2360 = vld [vmem:[%s720] sm:$0x1]
      %v2361 = vsel %vm786, %v2355, 0.0
      %2362 = vadd.xlane.f32.xlu0 %v2361
      %v2363 = vpop.xlane.xlu0 %2362
      %v2364 = vsel %vm786, %v2357, 0.0
      %2365 = vadd.xlane.f32.xlu0 %v2364
      %v2366 = vpop.xlane.xlu0 %2365
      %v2367 = vmul.f32 %v2363, %v2169
      %v2368 = vmul.f32 %v2366, %v2169
      %v2369 = vsub.f32 %v2355, %v2367
      %v2370 = vsub.f32 %v2357, %v2368
      %v2371 = vmul.f32 %v2369, %v2369
      %v2372 = vmul.f32 %v2370, %v2370
      %v2373 = vsel %vm786, %v2371, 0.0
      %2374 = vadd.xlane.f32.xlu0 %v2373
      %v2375 = vpop.xlane.xlu0 %2374
      %v2376 = vsel %vm786, %v2372, 0.0
      %2377 = vadd.xlane.f32.xlu0 %v2376
      %v2378 = vpop.xlane.xlu0 %2377
      %v2379 = vmul.f32 %v2375, %v2169
      %v2380 = vmul.f32 %v2378, %v2169
      %v2381 = vadd.f32 %v2379, 1e-05
      %v2382 = vadd.f32 %v2380, 1e-05
      %v2383 = vrsqrt.pop %v2381
      %v2384 = vmul.f32 %v2383, %v2381
      %v2385 = vmul.f32 %v2384, %v2383
      %v2386 = vmul.f32 0.5, %v2385
      %v2387 = vsub.f32 1.5, %v2386
      %v2388 = vmul.f32 %v2383, %v2387
      %vm2389 = vweird.f32 %v2381
      %vm2390 = vweird.f32 %v2383
      %vm2391 = vmor %vm2389, %vm2390
      %v2392 = vsel %vm2391, %v2383, %v2388
      %v2393 = vrsqrt.pop %v2382
      %v2394 = vmul.f32 %v2393, %v2382
      %v2395 = vmul.f32 %v2394, %v2393
      %v2396 = vmul.f32 0.5, %v2395
      %v2397 = vsub.f32 1.5, %v2396
      %v2398 = vmul.f32 %v2393, %v2397
      %vm2399 = vweird.f32 %v2382
      %vm2400 = vweird.f32 %v2393
      %vm2401 = vmor %vm2399, %vm2400
      %v2402 = vsel %vm2401, %v2393, %v2398
      %v2403 = vmul.f32 %v2369, %v2392
      %v2404 = vmul.f32 %v2370, %v2402
      %v2406 = vperm.slane %v2359, 0
      %v2408 = vmul.f32 %v2403, %v2406
      %v2409 = vmul.f32 %v2404, %v2406
      %v2411 = vperm.slane %v2360, 0
      %v2413 = vadd.f32 %v2408, %v2411
      %v2414 = vadd.f32 %v2409, %v2411
      %v2415 = vadd.f32 %v2413, %v2218
      %v2416 = vadd.f32 %v2414, %v2219
      %p2417 = scmp.lt.s32.totalorder %s31, 0
      %s2418 = ssub.s32 0, %s31
      %s2419 = scalar_select %p2417, %s2418, %s31
      %s2420 = sand.u32 %s2419, 1
      %s2421 = ssub.s32 0, %s2420
      %s2422 = scalar_select %p2417, %s2421, %s2420
      %p2423 = scmp.ne.s32.totalorder %s2422, 0
      %p2424 = scmp.lt.s32.totalorder %s2422, 0
      %p2425 = pnand %p2424, %p2423
      %p2426 = pneg %p2425
      %s2427 = sadd.s32 %s2422, 2
      %s2428 = scalar_select %p2426, %s2427, %s2422
      %p2429 = scmp.eq.s32.totalorder %s2428, 0
      %v2432 = vrot.slane %v2415, 4
      %v2433 = vrot.slane %v2416, 4
      %v2434 = vsel %vm1859, %v2432, %v2433
      %v2438 = vsel %vm1859, %v2433, %v2432
      %s2439 = scalar_select %p2429, 1, 0
      %v2440 = vstv %s2439
      %vm2441 = vcmp.eq.s32.totalorder %v2440, 1
      %v2442 = vsel %vm2441, %v2434, %v2438
      %v2443 = vsel %vm2441, %v2438, %v2434
      %2444 = vst.msk [vmem:[#allocation2] sm:$0xff] %vm786, %v2442
      %2445 = vst.msk [vmem:[#allocation2 + $0x8] sm:$0xff] %vm786, %v2443
      %2446 = vst.msk [vmem:[%s738] sm:$0xff] %vm786, %v2442
      %2447 = vst.msk [vmem:[%s738 + $0x8] sm:$0xff] %vm786, %v2443
      %p2448 = scmp.lt.s32.totalorder %s30, 1
      %s2449 = scalar_select %p2448, %s30, 1
      %s2450 = smul.addr %s2449, 2
      %s2451 = smul.addr %s2450, 8
      %s2452 = scalar_lea.vmem %s15, %s2451
      // Predicated region
      $region85: #{basic_layer_forward.1} parent=79 // pred_check
        %p2453 = pneg %p446
      $region86: #{basic_layer_forward.1} parent=79 // pred_check_branch
        %2455 = sbr.rel (%p2453) target = $region88
      $region87: #{basic_layer_forward.1} parent=79 // pred_region
        _
      $region88: #{basic_layer_forward.1} parent=79 // pred_fallthru
        _
    $region80: #{basic_layer_forward.1} parent=5 // pred_fallthru
      _
    %p2456 = scmp.le.s32.totalorder 2, %s21
    // Predicated region
    $region89: #{basic_layer_forward.1} parent=5 // pred_check
      %p2457 = pneg %p2456
    $region90: #{basic_layer_forward.1} parent=5 // pred_check_branch
      %2459 = sbr.rel (%p2457) target = $region92
    $region91: #{basic_layer_forward.1} parent=5 // pred_region
      %s2460 = ssub.s32 %s21, 2
      // Predicated region
      $region93: #{basic_layer_forward.1} parent=91 // pred_check
        %p2461 = pneg %p452
      $region94: #{basic_layer_forward.1} parent=91 // pred_check_branch
        %2463 = sbr.rel (%p2461) target = $region96
      $region95: #{basic_layer_forward.1} parent=91 // pred_region
        %p2464 = scmp.lt.s32.totalorder %s32, 1
        %s2465 = scalar_select %p2464, %s32, 1
        %s2466 = smul.addr %s2465, 2
        %s2467 = smul.addr %s2466, 8
        %s2468 = scalar_lea.vmem %s15, %s2467
      $region96: #{basic_layer_forward.1} parent=91 // pred_fallthru
        _
    $region92: #{basic_layer_forward.1} parent=5 // pred_fallthru
      _
  $region6: #{basic_layer_forward.1} parent=0 // loop_footer
    %s25 = sadd.s32 1, %s21
  $region7: #{basic_layer_forward.1} parent=0 // loop_footer_branch
    %20 = sbr.rel target = $region3
  $region8: #{basic_layer_forward.1} parent=0 // loop_exit
    _

</llo_original>
